<compile_context>
chip_gen: v7x
topology: tpu7x:2x2x1
jax: 0.10.0
libtpu: 0.0.40
codegen_flags: <defaults>
</compile_context>

<pallas_src>
import functools

import jax
import jax.numpy as jnp
from jax.experimental import pallas as pl
from jax.experimental.pallas import tpu as pltpu

# ----------------------------- model dimensions ------------------------------
C_IN = 3            # backbone in_channels=3
C_STEM = 16         # reduced stem width (b4 stem is 48)  -- small synthetic model
C_HEAD = 64         # reduced head width (b4 head is 1792)
C_HEAD_PAD = 128    # lane-dense padded head / pooled-feature width
OUT_NEURONS = 500
OUT_PAD = 512       # lane-dense padded out_neurons
META_IN = 9         # n_meta_features
META_NEURONS = 250
META_PAD = 256      # lane-dense padded meta_neurons
N_CLASSES = 2
N_CLASSES_PAD = 128
BN_EPS_CONV = 1e-3  # EfficientNet BatchNorm2d eps
BN_EPS_FC = 1e-5    # torch BatchNorm1d default eps
GEM_EPS = 1e-6

VMEM = pltpu.MemorySpace.VMEM
SMEM = pltpu.MemorySpace.SMEM


# ------------------------------ Pallas kernels --------------------------------
def _backbone_kernel(p_ref, patches_ref, stem_w_ref, stem_b_ref,
                     head_w_ref, head_b_ref, o_ref, *, n, hw, gem_eps):
    """Batch-folded: stem conv + BN + swish -> 1x1 head conv + BN + swish -> GeM."""
    x = patches_ref[...]                                         # [n*HW, patch] bf16
    # stem conv as one big matmul (bf16 operands, f32 accumulate), folded BN
    y = jnp.dot(x, stem_w_ref[...], preferred_element_type=jnp.float32)
    y = y + stem_b_ref[...]
    # swish: sigmoid on bf16 (bf16 EUP on v6e/v7x); multiply stays in f32
    y = y * jax.nn.sigmoid(y.astype(jnp.bfloat16)).astype(jnp.float32)
    # 1x1 head conv (output channels zero-padded to 128 lanes), folded BN, swish
    z = jnp.dot(y.astype(jnp.bfloat16), head_w_ref[...],
                preferred_element_type=jnp.float32)
    z = z + head_b_ref[...]
    z = z * jax.nn.sigmoid(z.astype(jnp.bfloat16)).astype(jnp.float32)
    # GeM pooling: per-image mean over the spatial rows; log/exp path in f32.
    p = p_ref[0, 0]
    zc = jnp.maximum(z, gem_eps)                                 # clamp(min=eps)
    zp = jnp.exp(p * jnp.log(zc))                                # x ** p  (x > 0)
    rows = []
    for i in range(n):                                           # n static, small
        m = jnp.mean(zp[i * hw:(i + 1) * hw, :], axis=0, keepdims=True)  # [1,128]
        rows.append(jnp.exp(jnp.log(m) / p))                     # ** (1/p)
    o_ref[...] = jnp.concatenate(rows, axis=0)                   # [n, 128]


def backbone_forward(patches, n, hw, gem_p, stem_w, stem_b, head_w, head_b):
    """patches: [n*HW, kh*kw*Cin] bf16 -> pooled features [n, C_HEAD_PAD] f32."""
    nh, patch = patches.shape
    kernel = functools.partial(_backbone_kernel, n=n, hw=hw, gem_eps=GEM_EPS)
    flops = 2 * nh * (patch * C_STEM + C_STEM * C_HEAD_PAD)
    transcendentals = nh * (C_STEM + 3 * C_HEAD_PAD) + 2 * n * C_HEAD_PAD
    bytes_acc = (patches.size * 2
                 + (stem_w.size + head_w.size) * 2
                 + (stem_b.size + head_b.size) * 4
                 + n * C_HEAD_PAD * 4)
    return pl.pallas_call(
        kernel,
        out_shape=jax.ShapeDtypeStruct((n, C_HEAD_PAD), jnp.float32),
        in_specs=[
            pl.BlockSpec(memory_space=SMEM),   # gem p (scalar)
            pl.BlockSpec(memory_space=VMEM),   # folded patches
            pl.BlockSpec(memory_space=VMEM),   # stem W
            pl.BlockSpec(memory_space=VMEM),   # stem shift
            pl.BlockSpec(memory_space=VMEM),   # head W
            pl.BlockSpec(memory_space=VMEM),   # head shift
        ],
        out_specs=pl.BlockSpec(memory_space=VMEM),
        cost_estimate=pl.CostEstimate(flops=flops,
                                      transcendentals=transcendentals,
                                      bytes_accessed=bytes_acc),
    )(gem_p.reshape(1, 1).astype(jnp.float32), patches,
      stem_w, stem_b, head_w, head_b)


def _head_kernel(pooled_ref, meta_ref, fc_w_ref, fc_b_ref,
                 m1_w_ref, m1_b_ref, m2_w_ref, m2_b_ref,
                 arc_w1_ref, arc_w2_ref, arc_wscale_ref, o_ref):
    """Fused: backbone._fc + meta_fc + ArcMarginProduct (cosine logits)."""
    # backbone._fc : pooled (GeM, padded to 128) -> 512 (500 real), bias only
    cnn = jnp.dot(pooled_ref[...].astype(jnp.bfloat16), fc_w_ref[...],
                  preferred_element_type=jnp.float32) + fc_b_ref[...]
    # meta_fc: (Linear + BN + ReLU + Dropout) x 2 in eval mode; BN folded into W/b
    m1 = jnp.dot(meta_ref[...].astype(jnp.bfloat16), m1_w_ref[...],
                 preferred_element_type=jnp.float32) + m1_b_ref[...]
    m1 = jnp.maximum(m1, 0.0)
    m2 = jnp.dot(m1.astype(jnp.bfloat16), m2_w_ref[...],
                 preferred_element_type=jnp.float32) + m2_b_ref[...]
    m2 = jnp.maximum(m2, 0.0)
    # ArcMarginProduct: cosine = normalize(concat(cnn, m2)) @ normalize(W).T
    # Both the norm and the dot use the SAME bf16-rounded feature values, and
    # the weight side is re-normalized after its bf16 cast (arc_wscale), so
    # |cosine| <= 1 up to f32 accumulation rounding.  Concat never materializes.
    cnn_bf = cnn.astype(jnp.bfloat16)
    m2_bf = m2.astype(jnp.bfloat16)
    cnn_f = cnn_bf.astype(jnp.float32)
    m2_f = m2_bf.astype(jnp.float32)
    sumsq = (jnp.sum(cnn_f * cnn_f, axis=1, keepdims=True)
             + jnp.sum(m2_f * m2_f, axis=1, keepdims=True))
    inv_norm = jax.lax.rsqrt(jnp.maximum(sumsq, 1e-24))   # == 1 / max(||x||, 1e-12)
    logits = (jnp.dot(cnn_bf, arc_w1_ref[...], preferred_element_type=jnp.float32)
              + jnp.dot(m2_bf, arc_w2_ref[...], preferred_element_type=jnp.float32))
    o_ref[...] = logits * inv_norm * arc_wscale_ref[...]


def head_forward(pooled, meta, fc_w, fc_b, m1_w, m1_b, m2_w, m2_b,
                 arc_w1, arc_w2, arc_wscale):
    n = pooled.shape[0]
    flops = 2 * n * (C_HEAD_PAD * OUT_PAD + META_IN * OUT_PAD
                     + OUT_PAD * META_PAD + (OUT_PAD + META_PAD) * N_CLASSES_PAD)
    bytes_acc = (4 * (pooled.size + meta.size + fc_b.size + m1_b.size + m2_b.size
                      + arc_wscale.size + n * N_CLASSES_PAD)
                 + 2 * (fc_w.size + m1_w.size + m2_w.size + arc_w1.size + arc_w2.size))
    return pl.pallas_call(
        _head_kernel,
        out_shape=jax.ShapeDtypeStruct((n, N_CLASSES_PAD), jnp.float32),
        in_specs=[pl.BlockSpec(memory_space=VMEM)] * 11,
        out_specs=pl.BlockSpec(memory_space=VMEM),
        cost_estimate=pl.CostEstimate(flops=flops, transcendentals=2 * n,
                                      bytes_accessed=bytes_acc),
    )(pooled, meta, fc_w, fc_b, m1_w, m1_b, m2_w, m2_b, arc_w1, arc_w2, arc_wscale)


# ------------------------------ plain-JAX glue ---------------------------------
def _same_pad_amount(size, k, s):
    out = -(-size // s)
    pad = max((out - 1) * s + k - size, 0)
    return pad // 2, pad - pad // 2


def im2col_nhwc(x, kh, kw, stride):
    """TF-'same' padded patch extraction (EfficientNet Conv2dStaticSamePadding)."""
    n, h, w, c = x.shape
    pt, pb = _same_pad_amount(h, kh, stride)
    plft, prt = _same_pad_amount(w, kw, stride)
    xp = jnp.pad(x, ((0, 0), (pt, pb), (plft, prt), (0, 0)))
    ho = (h + pt + pb - kh) // stride + 1
    wo = (w + plft + prt - kw) // stride + 1
    cols = []
    for i in range(kh):
        for j in range(kw):
            cols.append(xp[:, i:i + stride * ho:stride, j:j + stride * wo:stride, :])
    return jnp.concatenate(cols, axis=-1), ho, wo     # [N, Ho, Wo, kh*kw*C]


def fold_bn(bn, eps):
    scale = bn["gamma"] / jnp.sqrt(bn["var"] + eps)
    shift = bn["beta"] - bn["mean"] * scale
    return scale, shift


def conv_weight_to_mat(w_torch_layout):
    """[Cout, Cin, kh, kw] -> [kh*kw*Cin, Cout] (matches im2col (i, j, c) order)."""
    cout, cin, kh, kw = w_torch_layout.shape
    return jnp.transpose(w_torch_layout, (2, 3, 1, 0)).reshape(kh * kw * cin, cout)


# ------------------------------ forward pass -----------------------------------
def forward(params, x_nchw, meta):
    x = jnp.transpose(x_nchw, (0, 2, 3, 1)).astype(jnp.float32)   # NCHW -> NHWC
    n = x.shape[0]

    # ---- trace-time constant folding (BN scales into weights, bf16 weights) ----
    s, t = fold_bn(params["stem_bn"], BN_EPS_CONV)
    stem_w = (conv_weight_to_mat(params["stem_w"]) * s[None, :]).astype(jnp.bfloat16)
    stem_b = t.reshape(1, C_STEM).astype(jnp.float32)

    s, t = fold_bn(params["head_bn"], BN_EPS_CONV)
    head_w = conv_weight_to_mat(params["head_w"]) * s[None, :]
    head_w = jnp.pad(head_w, ((0, 0), (0, C_HEAD_PAD - C_HEAD))).astype(jnp.bfloat16)
    head_b = jnp.pad(t, (0, C_HEAD_PAD - C_HEAD)).reshape(1, C_HEAD_PAD).astype(jnp.float32)

    # backbone._fc : input 64->128 (NOTE: padded pooled lanes hold ~GEM_EPS, not 0 —
    # harmless only because these weight rows are zero); output 500->512 zero-padded.
    fc_w = jnp.pad(params["fc_w"].T,
                   ((0, C_HEAD_PAD - C_HEAD),
                    (0, OUT_PAD - OUT_NEURONS))).astype(jnp.bfloat16)
    fc_b = jnp.pad(params["fc_b"],
                   (0, OUT_PAD - OUT_NEURONS)).reshape(1, OUT_PAD).astype(jnp.float32)

    # meta_fc with BatchNorm1d folded into the Linear weights / biases; padded
    # output columns are zero-weight + zero-bias => ReLU(0)=0 downstream-safe.
    s1, t1 = fold_bn(params["meta_bn1"], BN_EPS_FC)
    m1_w = jnp.pad(params["meta1_w"].T * s1[None, :],
                   ((0, 0), (0, OUT_PAD - OUT_NEURONS))).astype(jnp.bfloat16)
    m1_b = jnp.pad(params["meta1_b"] * s1 + t1,
                   (0, OUT_PAD - OUT_NEURONS)).reshape(1, OUT_PAD).astype(jnp.float32)
    s2, t2 = fold_bn(params["meta_bn2"], BN_EPS_FC)
    m2_w = jnp.pad(params["meta2_w"].T * s2[None, :],
                   ((0, OUT_PAD - OUT_NEURONS),
                    (0, META_PAD - META_NEURONS))).astype(jnp.bfloat16)
    m2_b = jnp.pad(params["meta2_b"] * s2 + t2,
                   (0, META_PAD - META_NEURONS)).reshape(1, META_PAD).astype(jnp.float32)

    # ArcMargin weight: F.normalize rows in f32, split at the 500/250 boundary,
    # pad, cast to bf16, then re-normalize the bf16-quantized rows with a
    # per-class f32 scale so the cosine bound is preserved.
    aw = params["arc_w"]
    aw = aw * jax.lax.rsqrt(jnp.maximum(jnp.sum(aw * aw, axis=1, keepdims=True), 1e-24))
    arc_w1 = jnp.pad(aw[:, :OUT_NEURONS].T,
                     ((0, OUT_PAD - OUT_NEURONS),
                      (0, N_CLASSES_PAD - N_CLASSES))).astype(jnp.bfloat16)
    arc_w2 = jnp.pad(aw[:, OUT_NEURONS:].T,
                     ((0, META_PAD - META_NEURONS),
                      (0, N_CLASSES_PAD - N_CLASSES))).astype(jnp.bfloat16)
    w_bf = jnp.concatenate([arc_w1.astype(jnp.float32),
                            arc_w2.astype(jnp.float32)], axis=0)
    arc_wscale = jax.lax.rsqrt(
        jnp.maximum(jnp.sum(w_bf * w_bf, axis=0, keepdims=True), 1e-24))  # [1, 128]

    # ---- backbone: batch-folded stem + head conv + GeM in one kernel call ----
    # TODO(synk): the 32 MBConv blocks of EfficientNet-b4 (depthwise conv + SE +
    # residuals) are not reproduced; the backbone is reduced to stem + head convs.
    # TODO(synk): at production image sizes, move im2col in-kernel (pl.ANY +
    # make_async_copy over overlapping row windows), tile HW with a running GeM
    # accumulator finalized via pl.when (critical for v7x's 64 MiB VMEM), and
    # split the folded row space over a "parallel" grid axis for both v7x TCs.
    patches, ho, wo = im2col_nhwc(x, 3, 3, 2)
    hw = ho * wo
    patches = patches.reshape(n * hw, -1).astype(jnp.bfloat16)   # bf16 halves DMA bytes
    pooled = backbone_forward(patches, n, hw, params["gem_p"],
                              stem_w, stem_b, head_w, head_b)     # [N, 128] f32

    # ---- fc + meta_fc + ArcMargin fused in one kernel; slice padded classes ----
    logits = head_forward(pooled, meta.astype(jnp.float32), fc_w, fc_b,
                          m1_w, m1_b, m2_w, m2_b, arc_w1, arc_w2, arc_wscale)
    return logits[:, :N_CLASSES]                                   # [N, 2]


# ------------------------------ parameter init ----------------------------------
def init_params(key):
    ks = iter(jax.random.split(key, 32))

    def nrm(shape, scale=0.1):
        return scale * jax.random.normal(next(ks), shape, jnp.float32)

    def bn(c):
        return dict(gamma=1.0 + nrm((c,)), beta=nrm((c,)),
                    mean=nrm((c,)),
                    var=1.0 + 0.1 * jnp.abs(jax.random.normal(next(ks), (c,), jnp.float32)))

    return dict(
        stem_w=nrm((C_STEM, C_IN, 3, 3)),          # torch conv layout [Cout,Cin,kh,kw]
        stem_bn=bn(C_STEM),
        head_w=nrm((C_HEAD, C_STEM, 1, 1)),
        head_bn=bn(C_HEAD),
        gem_p=jnp.array([3.0], jnp.float32),       # GeM p parameter (init 3)
        fc_w=nrm((OUT_NEURONS, C_HEAD)),           # torch Linear layout [out, in]
        fc_b=nrm((OUT_NEURONS,)),
        meta1_w=nrm((OUT_NEURONS, META_IN)),
        meta1_b=nrm((OUT_NEURONS,)),
        meta_bn1=bn(OUT_NEURONS),
        meta2_w=nrm((META_NEURONS, OUT_NEURONS)),
        meta2_b=nrm((META_NEURONS,)),
        meta_bn2=bn(META_NEURONS),
        arc_w=nrm((N_CLASSES, OUT_NEURONS + META_NEURONS)),
    )


# ----------------------------------- main ----------------------------------------
if __name__ == "__main__":
    key = jax.random.PRNGKey(0)
    kp, kx, km = jax.random.split(key, 3)
    params = init_params(kp)

    x = jax.random.normal(kx, (2, C_IN, 16, 16), jnp.float32)   # NCHW, like PyTorch
    meta_data = jax.random.normal(km, (2, META_IN), jnp.float32)

    out = jax.jit(forward)(params, x, meta_data)
    out = jax.block_until_ready(out)
    assert out.shape == (2, N_CLASSES)
    assert bool(jnp.all(jnp.isfinite(out)))
    # cosine logits must lie in [-1, 1]
    assert bool(jnp.all(jnp.abs(out) <= 1.0 + 1e-4))
    print("KERNEL_OK")
</pallas_src>

<mosaic_0001>
module attributes {stable_mosaic.version = 11 : i64} {
  func.func @_backbone_kernel(%arg0: memref<1x1xf32, #tpu.memory_space<smem>>, %arg1: memref<128x27xbf16, #tpu.memory_space<vmem>>, %arg2: memref<27x16xbf16, #tpu.memory_space<vmem>>, %arg3: memref<1x16xf32, #tpu.memory_space<vmem>>, %arg4: memref<16x128xbf16, #tpu.memory_space<vmem>>, %arg5: memref<1x128xf32, #tpu.memory_space<vmem>>, %arg6: memref<2x128xf32, #tpu.memory_space<vmem>>) attributes {dimension_semantics = [], scalar_prefetch = 0 : i64, scratch_operands = 0 : i64, tpu.core_type = #tpu.core_type<tc>} {
    %c0 = arith.constant 0 : index
    %c0_0 = arith.constant 0 : index
    %0 = vector.load %arg1[%c0, %c0_0] : memref<128x27xbf16, #tpu.memory_space<vmem>>, vector<128x27xbf16>
    %c0_1 = arith.constant 0 : index
    %c0_2 = arith.constant 0 : index
    %1 = vector.load %arg2[%c0_1, %c0_2] : memref<27x16xbf16, #tpu.memory_space<vmem>>, vector<27x16xbf16>
    %cst = arith.constant dense<0.000000e+00> : vector<128x16xf32>
    %2 = tpu.matmul %0, %1, %cst {dimension_numbers = #tpu.dot_dimension_numbers<[1], [0], [0], [1], [0, 0, 1, 1], [], []>} : vector<128x27xbf16>, vector<27x16xbf16>, vector<128x16xf32> -> vector<128x16xf32>
    %c0_3 = arith.constant 0 : index
    %c0_4 = arith.constant 0 : index
    %3 = vector.load %arg3[%c0_3, %c0_4] : memref<1x16xf32, #tpu.memory_space<vmem>>, vector<1x16xf32>
    %4 = vector.broadcast %3 : vector<1x16xf32> to vector<128x16xf32>
    %5 = arith.addf %2, %4 : vector<128x16xf32>
    %6 = arith.truncf %5 : vector<128x16xf32> to vector<128x16xbf16>
    %7 = arith.negf %6 : vector<128x16xbf16>
    %8 = math.exp %7 : vector<128x16xbf16>
    %cst_5 = arith.constant 1.000000e+00 : bf16
    %9 = vector.broadcast %cst_5 : bf16 to vector<128x16xbf16>
    %10 = arith.addf %9, %8 : vector<128x16xbf16>
    %11 = arith.divf %9, %10 : vector<128x16xbf16>
    %12 = arith.extf %11 : vector<128x16xbf16> to vector<128x16xf32>
    %13 = arith.mulf %5, %12 : vector<128x16xf32>
    %14 = arith.truncf %13 : vector<128x16xf32> to vector<128x16xbf16>
    %c0_6 = arith.constant 0 : index
    %c0_7 = arith.constant 0 : index
    %15 = vector.load %arg4[%c0_6, %c0_7] : memref<16x128xbf16, #tpu.memory_space<vmem>>, vector<16x128xbf16>
    %cst_8 = arith.constant dense<0.000000e+00> : vector<128x128xf32>
    %16 = tpu.matmul %14, %15, %cst_8 {dimension_numbers = #tpu.dot_dimension_numbers<[1], [0], [0], [1], [0, 0, 1, 1], [], []>} : vector<128x16xbf16>, vector<16x128xbf16>, vector<128x128xf32> -> vector<128x128xf32>
    %c0_9 = arith.constant 0 : index
    %c0_10 = arith.constant 0 : index
    %17 = vector.load %arg5[%c0_9, %c0_10] : memref<1x128xf32, #tpu.memory_space<vmem>>, vector<1x128xf32>
    %18 = vector.broadcast %17 : vector<1x128xf32> to vector<128x128xf32>
    %19 = arith.addf %16, %18 : vector<128x128xf32>
    %20 = arith.truncf %19 : vector<128x128xf32> to vector<128x128xbf16>
    %21 = arith.negf %20 : vector<128x128xbf16>
    %22 = math.exp %21 : vector<128x128xbf16>
    %cst_11 = arith.constant 1.000000e+00 : bf16
    %23 = vector.broadcast %cst_11 : bf16 to vector<128x128xbf16>
    %24 = arith.addf %23, %22 : vector<128x128xbf16>
    %25 = arith.divf %23, %24 : vector<128x128xbf16>
    %26 = arith.extf %25 : vector<128x128xbf16> to vector<128x128xf32>
    %27 = arith.mulf %19, %26 : vector<128x128xf32>
    %c0_12 = arith.constant 0 : index
    %c0_13 = arith.constant 0 : index
    %28 = memref.load %arg0[%c0_12, %c0_13] : memref<1x1xf32, #tpu.memory_space<smem>>
    %cst_14 = arith.constant 9.99999997E-7 : f32
    %29 = vector.broadcast %cst_14 : f32 to vector<128x128xf32>
    %30 = arith.maximumf %27, %29 : vector<128x128xf32>
    %31 = math.log %30 : vector<128x128xf32>
    %32 = vector.broadcast %28 : f32 to vector<128x128xf32>
    %33 = arith.mulf %32, %31 : vector<128x128xf32>
    %34 = math.exp %33 : vector<128x128xf32>
    %35 = vector.extract_strided_slice %34 {offsets = [0, 0], sizes = [64, 128], strides = [1, 1]} : vector<128x128xf32> to vector<64x128xf32>
    %cst_15 = arith.constant dense<0.000000e+00> : vector<128xf32>
    %36 = vector.multi_reduction <add>, %35, %cst_15 [0] : vector<64x128xf32> to vector<128xf32>
    %37 = vector.shape_cast %36 : vector<128xf32> to vector<1x128xf32>
    %cst_16 = arith.constant 6.400000e+01 : f32
    %38 = vector.broadcast %cst_16 : f32 to vector<1x128xf32>
    %39 = arith.divf %37, %38 : vector<1x128xf32>
    %40 = math.log %39 : vector<1x128xf32>
    %41 = vector.broadcast %28 : f32 to vector<1x128xf32>
    %42 = arith.divf %40, %41 : vector<1x128xf32>
    %43 = math.exp %42 : vector<1x128xf32>
    %44 = vector.extract_strided_slice %34 {offsets = [64, 0], sizes = [64, 128], strides = [1, 1]} : vector<128x128xf32> to vector<64x128xf32>
    %cst_17 = arith.constant dense<0.000000e+00> : vector<128xf32>
    %45 = vector.multi_reduction <add>, %44, %cst_17 [0] : vector<64x128xf32> to vector<128xf32>
    %46 = vector.shape_cast %45 : vector<128xf32> to vector<1x128xf32>
    %cst_18 = arith.constant 6.400000e+01 : f32
    %47 = vector.broadcast %cst_18 : f32 to vector<1x128xf32>
    %48 = arith.divf %46, %47 : vector<1x128xf32>
    %49 = math.log %48 : vector<1x128xf32>
    %50 = vector.broadcast %28 : f32 to vector<1x128xf32>
    %51 = arith.divf %49, %50 : vector<1x128xf32>
    %52 = math.exp %51 : vector<1x128xf32>
    %53 = tpu.concatenate %43, %52 in 0 : vector<1x128xf32>, vector<1x128xf32> -> vector<2x128xf32>
    %c0_19 = arith.constant 0 : index
    %c0_20 = arith.constant 0 : index
    %54 = vector.load %arg6[%c0_19, %c0_20] : memref<2x128xf32, #tpu.memory_space<vmem>>, vector<2x128xf32>
    tpu.vector_store %arg6[%c0_19, %c0_20], %53 {strides = array<i32>} : memref<2x128xf32, #tpu.memory_space<vmem>>, vector<2x128xf32>,
    return
  }
}

module attributes {stable_mosaic.version = 11 : i64} {
  func.func @_head_kernel(%arg0: memref<2x128xf32, #tpu.memory_space<vmem>>, %arg1: memref<2x9xf32, #tpu.memory_space<vmem>>, %arg2: memref<128x512xbf16, #tpu.memory_space<vmem>>, %arg3: memref<1x512xf32, #tpu.memory_space<vmem>>, %arg4: memref<9x512xbf16, #tpu.memory_space<vmem>>, %arg5: memref<1x512xf32, #tpu.memory_space<vmem>>, %arg6: memref<512x256xbf16, #tpu.memory_space<vmem>>, %arg7: memref<1x256xf32, #tpu.memory_space<vmem>>, %arg8: memref<512x128xbf16, #tpu.memory_space<vmem>>, %arg9: memref<256x128xbf16, #tpu.memory_space<vmem>>, %arg10: memref<1x128xf32, #tpu.memory_space<vmem>>, %arg11: memref<2x128xf32, #tpu.memory_space<vmem>>) attributes {dimension_semantics = [], scalar_prefetch = 0 : i64, scratch_operands = 0 : i64, tpu.core_type = #tpu.core_type<tc>} {
    %c0 = arith.constant 0 : index
    %c0_0 = arith.constant 0 : index
    %0 = vector.load %arg0[%c0, %c0_0] : memref<2x128xf32, #tpu.memory_space<vmem>>, vector<2x128xf32>
    %1 = arith.truncf %0 : vector<2x128xf32> to vector<2x128xbf16>
    %c0_1 = arith.constant 0 : index
    %c0_2 = arith.constant 0 : index
    %2 = vector.load %arg2[%c0_1, %c0_2] : memref<128x512xbf16, #tpu.memory_space<vmem>>, vector<128x512xbf16>
    %cst = arith.constant dense<0.000000e+00> : vector<2x512xf32>
    %3 = tpu.matmul %1, %2, %cst {dimension_numbers = #tpu.dot_dimension_numbers<[1], [0], [0], [1], [0, 0, 1, 1], [], []>} : vector<2x128xbf16>, vector<128x512xbf16>, vector<2x512xf32> -> vector<2x512xf32>
    %c0_3 = arith.constant 0 : index
    %c0_4 = arith.constant 0 : index
    %4 = vector.load %arg3[%c0_3, %c0_4] : memref<1x512xf32, #tpu.memory_space<vmem>>, vector<1x512xf32>
    %5 = vector.broadcast %4 : vector<1x512xf32> to vector<2x512xf32>
    %6 = arith.addf %3, %5 : vector<2x512xf32>
    %c0_5 = arith.constant 0 : index
    %c0_6 = arith.constant 0 : index
    %7 = vector.load %arg1[%c0_5, %c0_6] : memref<2x9xf32, #tpu.memory_space<vmem>>, vector<2x9xf32>
    %8 = arith.truncf %7 : vector<2x9xf32> to vector<2x9xbf16>
    %c0_7 = arith.constant 0 : index
    %c0_8 = arith.constant 0 : index
    %9 = vector.load %arg4[%c0_7, %c0_8] : memref<9x512xbf16, #tpu.memory_space<vmem>>, vector<9x512xbf16>
    %cst_9 = arith.constant dense<0.000000e+00> : vector<2x512xf32>
    %10 = tpu.matmul %8, %9, %cst_9 {dimension_numbers = #tpu.dot_dimension_numbers<[1], [0], [0], [1], [0, 0, 1, 1], [], []>} : vector<2x9xbf16>, vector<9x512xbf16>, vector<2x512xf32> -> vector<2x512xf32>
    %c0_10 = arith.constant 0 : index
    %c0_11 = arith.constant 0 : index
    %11 = vector.load %arg5[%c0_10, %c0_11] : memref<1x512xf32, #tpu.memory_space<vmem>>, vector<1x512xf32>
    %12 = vector.broadcast %11 : vector<1x512xf32> to vector<2x512xf32>
    %13 = arith.addf %10, %12 : vector<2x512xf32>
    %cst_12 = arith.constant 0.000000e+00 : f32
    %14 = vector.broadcast %cst_12 : f32 to vector<2x512xf32>
    %15 = arith.maximumf %13, %14 : vector<2x512xf32>
    %16 = arith.truncf %15 : vector<2x512xf32> to vector<2x512xbf16>
    %c0_13 = arith.constant 0 : index
    %c0_14 = arith.constant 0 : index
    %17 = vector.load %arg6[%c0_13, %c0_14] : memref<512x256xbf16, #tpu.memory_space<vmem>>, vector<512x256xbf16>
    %cst_15 = arith.constant dense<0.000000e+00> : vector<2x256xf32>
    %18 = tpu.matmul %16, %17, %cst_15 {dimension_numbers = #tpu.dot_dimension_numbers<[1], [0], [0], [1], [0, 0, 1, 1], [], []>} : vector<2x512xbf16>, vector<512x256xbf16>, vector<2x256xf32> -> vector<2x256xf32>
    %c0_16 = arith.constant 0 : index
    %c0_17 = arith.constant 0 : index
    %19 = vector.load %arg7[%c0_16, %c0_17] : memref<1x256xf32, #tpu.memory_space<vmem>>, vector<1x256xf32>
    %20 = vector.broadcast %19 : vector<1x256xf32> to vector<2x256xf32>
    %21 = arith.addf %18, %20 : vector<2x256xf32>
    %cst_18 = arith.constant 0.000000e+00 : f32
    %22 = vector.broadcast %cst_18 : f32 to vector<2x256xf32>
    %23 = arith.maximumf %21, %22 : vector<2x256xf32>
    %24 = arith.truncf %6 : vector<2x512xf32> to vector<2x512xbf16>
    %25 = arith.truncf %23 : vector<2x256xf32> to vector<2x256xbf16>
    %26 = arith.extf %24 : vector<2x512xbf16> to vector<2x512xf32>
    %27 = arith.extf %25 : vector<2x256xbf16> to vector<2x256xf32>
    %28 = arith.mulf %26, %26 : vector<2x512xf32>
    %cst_19 = arith.constant dense<0.000000e+00> : vector<2xf32>
    %29 = vector.multi_reduction <add>, %28, %cst_19 [1] : vector<2x512xf32> to vector<2xf32>
    %30 = vector.shape_cast %29 : vector<2xf32> to vector<2x1xf32>
    %31 = arith.mulf %27, %27 : vector<2x256xf32>
    %cst_20 = arith.constant dense<0.000000e+00> : vector<2xf32>
    %32 = vector.multi_reduction <add>, %31, %cst_20 [1] : vector<2x256xf32> to vector<2xf32>
    %33 = vector.shape_cast %32 : vector<2xf32> to vector<2x1xf32>
    %34 = arith.addf %30, %33 : vector<2x1xf32>
    %cst_21 = arith.constant 1.000000e-24 : f32
    %35 = vector.broadcast %cst_21 : f32 to vector<2x1xf32>
    %36 = arith.maximumf %34, %35 : vector<2x1xf32>
    %37 = math.rsqrt %36 : vector<2x1xf32>
    %c0_22 = arith.constant 0 : index
    %c0_23 = arith.constant 0 : index
    %38 = vector.load %arg8[%c0_22, %c0_23] : memref<512x128xbf16, #tpu.memory_space<vmem>>, vector<512x128xbf16>
    %cst_24 = arith.constant dense<0.000000e+00> : vector<2x128xf32>
    %39 = tpu.matmul %24, %38, %cst_24 {dimension_numbers = #tpu.dot_dimension_numbers<[1], [0], [0], [1], [0, 0, 1, 1], [], []>} : vector<2x512xbf16>, vector<512x128xbf16>, vector<2x128xf32> -> vector<2x128xf32>
    %c0_25 = arith.constant 0 : index
    %c0_26 = arith.constant 0 : index
    %40 = vector.load %arg9[%c0_25, %c0_26] : memref<256x128xbf16, #tpu.memory_space<vmem>>, vector<256x128xbf16>
    %cst_27 = arith.constant dense<0.000000e+00> : vector<2x128xf32>
    %41 = tpu.matmul %25, %40, %cst_27 {dimension_numbers = #tpu.dot_dimension_numbers<[1], [0], [0], [1], [0, 0, 1, 1], [], []>} : vector<2x256xbf16>, vector<256x128xbf16>, vector<2x128xf32> -> vector<2x128xf32>
    %42 = arith.addf %39, %41 : vector<2x128xf32>
    %43 = vector.broadcast %37 : vector<2x1xf32> to vector<2x128xf32>
    %44 = arith.mulf %42, %43 : vector<2x128xf32>
    %c0_28 = arith.constant 0 : index
    %c0_29 = arith.constant 0 : index
    %45 = vector.load %arg10[%c0_28, %c0_29] : memref<1x128xf32, #tpu.memory_space<vmem>>, vector<1x128xf32>
    %46 = vector.broadcast %45 : vector<1x128xf32> to vector<2x128xf32>
    %47 = arith.mulf %44, %46 : vector<2x128xf32>
    %c0_30 = arith.constant 0 : index
    %c0_31 = arith.constant 0 : index
    %48 = vector.load %arg11[%c0_30, %c0_31] : memref<2x128xf32, #tpu.memory_space<vmem>>, vector<2x128xf32>
    tpu.vector_store %arg11[%c0_30, %c0_31], %47 {strides = array<i32>} : memref<2x128xf32, #tpu.memory_space<vmem>>, vector<2x128xf32>,
    return
  }
}

</mosaic_0001>

<llo_original>
// kernel: forward.2
$region0: #{forward.2}
  #allocation0 [shape = 'u32[]', space=smem, size = 0x4, offset = 0x4, fixed_abs, tag = 'smem constant byte address 0x4 - core index']
  #allocation1 [shape = 'u32[144,128]{1,0:T(1,128)}', space=vmem, size = 0x12000, scoped, tag = 'internal scratch']
  #allocation2 [shape = 'f32[1,1]{1,0:T(1,128)S(6)}', space=smem, size = 0x200, scoped, tag = 'scoped memory for forward.2']
  %s0 = inlined_call_operand.<no memory space> [shape: f32[1,1], index: 0, kind: input, shape index: {}]
  %s1 = inlined_call_operand.vmem [shape: bf16[128,27], index: 1, kind: input, shape index: {}]
  %s2 = inlined_call_operand.vmem [shape: bf16[27,16], index: 2, kind: input, shape index: {}]
  %s3 = inlined_call_operand.vmem [shape: f32[1,16], index: 3, kind: input, shape index: {}]
  %s4 = inlined_call_operand.vmem [shape: bf16[16,128], index: 4, kind: input, shape index: {}]
  %s5 = inlined_call_operand.vmem [shape: f32[1,128], index: 5, kind: input, shape index: {}]
  %s6 = inlined_call_operand.vmem [shape: f32[2,128], index: 6, kind: output, shape index: {}]
  %s7 = sld [smem:[#allocation0]]
  $region34: #{forward.2} parent=0
    _
  %s9 = ssub.s32 1, %s7
  %s10 = scalar_select 0, %s9, %s7
  %11 = sst [smem:[#allocation2]] %s0
  // Predicated region
  $region2: #{forward.2} parent=0 // pred_check
    _
  $region3: #{forward.2} parent=0 // pred_check_branch
    %13 = sbr.rel (0) target = $region5
  $region4: #{forward.2} parent=0 // pred_region
    _
  $region5: #{forward.2} parent=0 // pred_fallthru
    _
  // Predicated region
  $region6: #{forward.2} parent=0 // pred_check
    _
  $region7: #{forward.2} parent=0 // pred_check_branch
    %15 = sbr.rel (0) target = $region9
  $region8: #{forward.2} parent=0 // pred_region
    _
  $region9: #{forward.2} parent=0 // pred_fallthru
    _
  // Predicated region
  $region10: #{forward.2} parent=0 // pred_check
    _
  $region11: #{forward.2} parent=0 // pred_check_branch
    %17 = sbr.rel (0) target = $region13
  $region12: #{forward.2} parent=0 // pred_region
    _
  $region13: #{forward.2} parent=0 // pred_fallthru
    _
  // Predicated region
  $region14: #{forward.2} parent=0 // pred_check
    _
  $region15: #{forward.2} parent=0 // pred_check_branch
    %19 = sbr.rel (0) target = $region17
  $region16: #{forward.2} parent=0 // pred_region
    _
  $region17: #{forward.2} parent=0 // pred_fallthru
    _
  // Predicated region
  $region18: #{forward.2} parent=0 // pred_check
    _
  $region19: #{forward.2} parent=0 // pred_check_branch
    %21 = sbr.rel (0) target = $region21
  $region20: #{forward.2} parent=0 // pred_region
    _
  $region21: #{forward.2} parent=0 // pred_fallthru
    _
  // Predicated region
  $region22: #{forward.2} parent=0 // pred_check
    _
  $region23: #{forward.2} parent=0 // pred_check_branch
    %23 = sbr.rel (0) target = $region25
  $region24: #{forward.2} parent=0 // pred_region
    _
  $region25: #{forward.2} parent=0 // pred_fallthru
    _
  %v26 = vld [vmem:[%s1] sm:$0xf]
  %v27 = vld [vmem:[%s1 + $0x4] sm:$0xf]
  %v28 = vld [vmem:[%s1 + $0x8] sm:$0xf]
  %v29 = vld [vmem:[%s1 + $0xc] sm:$0xf]
  %v30 = vld [vmem:[%s1 + $0x10] sm:$0xf]
  %v31 = vld [vmem:[%s1 + $0x14] sm:$0xf]
  %v32 = vld [vmem:[%s1 + $0x18] sm:$0xf]
  %v33 = vld [vmem:[%s1 + $0x1c] sm:$0xf]
  %v34 = vld [vmem:[%s1 + $0x20] sm:$0xf]
  %v35 = vld [vmem:[%s1 + $0x24] sm:$0xf]
  %v36 = vld [vmem:[%s1 + $0x28] sm:$0xf]
  %v37 = vld [vmem:[%s1 + $0x2c] sm:$0xf]
  %v38 = vld [vmem:[%s1 + $0x30] sm:$0xf]
  %v39 = vld [vmem:[%s1 + $0x34] sm:$0xf]
  %v40 = vld [vmem:[%s1 + $0x38] sm:$0xf]
  %v41 = vld [vmem:[%s1 + $0x3c] sm:$0xf]
  %v42 = vld [vmem:[%s2] sm:$0xf]
  %v43 = vld [vmem:[%s2 + $0x4] sm:$0xf]
  %v44 = vld [vmem:[%s2 + $0x8] sm:$0xf]
  %v45 = vld [vmem:[%s2 + $0xc] sm:$0x3]
  %v46 = vld [vmem:[%s3] sm:$0x1]
  %v48 = vlaneseq
  %v49 = vshrl.u32 %v48, 7
  %v50 = vsub.s32 0, %v49
  %v51 = vrot.slane %v46, %v50
  %v69 = vunpack.c.l.b16 %v26
  %v70 = vunpack.c.l.b16 %v27
  %v71 = vunpack.c.l.b16 %v28
  %v72 = vunpack.c.l.b16 %v29
  %v73 = vunpack.c.l.b16 %v30
  %v74 = vunpack.c.l.b16 %v31
  %v75 = vunpack.c.l.b16 %v32
  %v76 = vunpack.c.l.b16 %v33
  %v77 = vunpack.c.l.b16 %v34
  %v78 = vunpack.c.l.b16 %v35
  %v79 = vunpack.c.l.b16 %v36
  %v80 = vunpack.c.l.b16 %v37
  %v81 = vunpack.c.l.b16 %v38
  %v82 = vunpack.c.l.b16 %v39
  %v83 = vunpack.c.l.b16 %v40
  %v84 = vunpack.c.l.b16 %v41
  %v85 = vpack.c.b16 %v70, %v69
  %v86 = vpack.c.b16 %v72, %v71
  %v87 = vpack.c.b16 %v74, %v73
  %v88 = vpack.c.b16 %v76, %v75
  %v89 = vpack.c.b16 %v78, %v77
  %v90 = vpack.c.b16 %v80, %v79
  %v91 = vpack.c.b16 %v82, %v81
  %v92 = vpack.c.b16 %v84, %v83
  %v97 = vunpack.c.l.b16 %v42
  %v98 = vunpack.c.l.b16 %v43
  %v99 = vunpack.c.l.b16 %v44
  %v100 = vunpack.c.l.b16 %v45
  %v101 = vpack.c.b16 %v98, %v97
  %v102 = vpack.c.b16 %v100, %v99
  %vm104 = vcmask 220160
  %v106 = vsel %vm104, %v85, 0
  %v109 = vsel %vm104, %v86, 0
  %v112 = vsel %vm104, %v87, 0
  %v115 = vsel %vm104, %v88, 0
  %v118 = vsel %vm104, %v89, 0
  %v121 = vsel %vm104, %v90, 0
  %v124 = vsel %vm104, %v91, 0
  %v127 = vsel %vm104, %v92, 0
  %vm129 = vcmask 1044480
  %vm130 = vcmask 1045504
  %v131 = vsel %vm129, 4294967295, 65535
  %v132 = vsel %vm130, %v131, 0
  %v134 = vand.u32 %v102, %v132
  %136 = vmatprep.subr.bf16.mxu0 0
  %137 = vmatpush1.bf16.msra.mxu0 %v101
  %138 = vmatprep.subr.bf16.mxu0 0
  %139 = vmatpush1.bf16.msra.mxu0 %v134
  %140 = vmatprep.subr.bf16.mxu0 0
  %141 = vmatpush1.bf16.msra.mxu0 0
  %142 = vmatprep.subr.bf16.mxu0 0
  %143 = vmatpush1.bf16.msra.mxu0 0
  %144 = vmatprep.subr.bf16.mxu0 0
  %145 = vmatpush1.bf16.msra.mxu0 0
  %146 = vmatprep.subr.bf16.mxu0 0
  %147 = vmatpush1.bf16.msra.mxu0 0
  %148 = vmatprep.subr.bf16.mxu0 0
  %149 = vmatpush1.bf16.msra.mxu0 0
  %150 = vmatprep.subr.bf16.mxu0 0
  %151 = vmatpush1.bf16.msra.mxu0 0
  %152 = vmatprep.subr.bf16.mxu0 0
  %153 = vmatpush1.bf16.msra.mxu0 0
  %154 = vmatprep.subr.bf16.mxu0 0
  %155 = vmatpush1.bf16.msra.mxu0 0
  %156 = vmatprep.subr.bf16.mxu0 0
  %157 = vmatpush1.bf16.msra.mxu0 0
  %158 = vmatprep.subr.bf16.mxu0 0
  %159 = vmatpush1.bf16.msra.mxu0 0
  %160 = vmatprep.subr.bf16.mxu0 0
  %161 = vmatpush1.bf16.msra.mxu0 0
  %162 = vmatprep.subr.bf16.mxu0 0
  %163 = vmatpush1.bf16.msra.mxu0 0
  %164 = vmatprep.subr.bf16.mxu0 0
  %165 = vmatpush1.bf16.msra.mxu0 0
  %166 = vmatprep.subr.bf16.mxu0 0
  %167 = vmatpush1.bf16.msra.mxu0 0
  %168 = vmatprep.mubr.bf16.mxu0 0
  %169 = vmatmul.mubr.bf16.gmra.mrb[0].mxu0 %v106
  %v170 = vpop.f32.mrb[0].mxu0
  %v171 = vadd.f32 %v51, %v170
  %v172 = vpop.f32.mrb[0].mxu0
  %v173 = vpop.f32.mrb[0].mxu0
  %v174 = vadd.f32 %v51, %v173
  %v175 = vpop.f32.mrb[0].mxu0
  %176 = vmatprep.mubr.bf16.mxu0 0
  %177 = vmatmul.mubr.bf16.gmra.mrb[0].mxu0 %v109
  %v178 = vpop.f32.mrb[0].mxu0
  %v179 = vadd.f32 %v51, %v178
  %v180 = vpop.f32.mrb[0].mxu0
  %v181 = vpop.f32.mrb[0].mxu0
  %v182 = vadd.f32 %v51, %v181
  %v183 = vpop.f32.mrb[0].mxu0
  %184 = vmatprep.mubr.bf16.mxu0 0
  %185 = vmatmul.mubr.bf16.gmra.mrb[0].mxu0 %v112
  %v186 = vpop.f32.mrb[0].mxu0
  %v187 = vadd.f32 %v51, %v186
  %v188 = vpop.f32.mrb[0].mxu0
  %v189 = vpop.f32.mrb[0].mxu0
  %v190 = vadd.f32 %v51, %v189
  %v191 = vpop.f32.mrb[0].mxu0
  %192 = vmatprep.mubr.bf16.mxu0 0
  %193 = vmatmul.mubr.bf16.gmra.mrb[0].mxu0 %v115
  %v194 = vpop.f32.mrb[0].mxu0
  %v195 = vadd.f32 %v51, %v194
  %v196 = vpop.f32.mrb[0].mxu0
  %v197 = vpop.f32.mrb[0].mxu0
  %v198 = vadd.f32 %v51, %v197
  %v199 = vpop.f32.mrb[0].mxu0
  %200 = vmatprep.mubr.bf16.mxu0 0
  %201 = vmatmul.mubr.bf16.gmra.mrb[0].mxu0 %v118
  %v202 = vpop.f32.mrb[0].mxu0
  %v203 = vadd.f32 %v51, %v202
  %v204 = vpop.f32.mrb[0].mxu0
  %v205 = vpop.f32.mrb[0].mxu0
  %v206 = vadd.f32 %v51, %v205
  %v207 = vpop.f32.mrb[0].mxu0
  %208 = vmatprep.mubr.bf16.mxu0 0
  %209 = vmatmul.mubr.bf16.gmra.mrb[0].mxu0 %v121
  %v210 = vpop.f32.mrb[0].mxu0
  %v211 = vadd.f32 %v51, %v210
  %v212 = vpop.f32.mrb[0].mxu0
  %v213 = vpop.f32.mrb[0].mxu0
  %v214 = vadd.f32 %v51, %v213
  %v215 = vpop.f32.mrb[0].mxu0
  %216 = vmatprep.mubr.bf16.mxu0 0
  %217 = vmatmul.mubr.bf16.gmra.mrb[0].mxu0 %v124
  %v218 = vpop.f32.mrb[0].mxu0
  %v219 = vadd.f32 %v51, %v218
  %v220 = vpop.f32.mrb[0].mxu0
  %v221 = vpop.f32.mrb[0].mxu0
  %v222 = vadd.f32 %v51, %v221
  %v223 = vpop.f32.mrb[0].mxu0
  %224 = vmatprep.mubr.bf16.mxu0 0
  %225 = vmatmul.mubr.bf16.gmra.mrb[0].mxu0 %v127
  %v226 = vpop.f32.mrb[0].mxu0
  %v227 = vadd.f32 %v51, %v226
  %v228 = vpop.f32.mrb[0].mxu0
  %v229 = vpop.f32.mrb[0].mxu0
  %v230 = vadd.f32 %v51, %v229
  %v231 = vpop.f32.mrb[0].mxu0
  %232 = vdwg.mxu0
  %v233 = vpack.c.bf16 %v174, %v171
  %v234 = vpack.c.bf16 %v182, %v179
  %v235 = vpack.c.bf16 %v190, %v187
  %v236 = vpack.c.bf16 %v198, %v195
  %v237 = vpack.c.bf16 %v206, %v203
  %v238 = vpack.c.bf16 %v214, %v211
  %v239 = vpack.c.bf16 %v222, %v219
  %v240 = vpack.c.bf16 %v230, %v227
  %v241 = vxor.u32 %v233, 2147516416
  %v242 = vxor.u32 %v234, 2147516416
  %v243 = vxor.u32 %v235, 2147516416
  %v244 = vxor.u32 %v236, 2147516416
  %v245 = vxor.u32 %v237, 2147516416
  %v246 = vxor.u32 %v238, 2147516416
  %v247 = vxor.u32 %v239, 2147516416
  %v248 = vxor.u32 %v240, 2147516416
  %v250 = vmul.bf16 %v241, 1069105081
  %v251 = vpow.bf16.pop %v250
  %v253 = vmul.bf16 %v242, 1069105081
  %v254 = vpow.bf16.pop %v253
  %v256 = vmul.bf16 %v243, 1069105081
  %v257 = vpow.bf16.pop %v256
  %v259 = vmul.bf16 %v244, 1069105081
  %v260 = vpow.bf16.pop %v259
  %v262 = vmul.bf16 %v245, 1069105081
  %v263 = vpow.bf16.pop %v262
  %v265 = vmul.bf16 %v246, 1069105081
  %v266 = vpow.bf16.pop %v265
  %v268 = vmul.bf16 %v247, 1069105081
  %v269 = vpow.bf16.pop %v268
  %v271 = vmul.bf16 %v248, 1069105081
  %v272 = vpow.bf16.pop %v271
  %v273 = vadd.bf16 %v251, 1065369472
  %v274 = vadd.bf16 %v254, 1065369472
  %v275 = vadd.bf16 %v257, 1065369472
  %v276 = vadd.bf16 %v260, 1065369472
  %v277 = vadd.bf16 %v263, 1065369472
  %v278 = vadd.bf16 %v266, 1065369472
  %v279 = vadd.bf16 %v269, 1065369472
  %v280 = vadd.bf16 %v272, 1065369472
  %v281 = vrcp.bf16.pop %v273
  %v282 = vmul.bf16 1065369472, %v281
  %v283 = vrcp.bf16.pop %v274
  %v284 = vmul.bf16 1065369472, %v283
  %v285 = vrcp.bf16.pop %v275
  %v286 = vmul.bf16 1065369472, %v285
  %v287 = vrcp.bf16.pop %v276
  %v288 = vmul.bf16 1065369472, %v287
  %v289 = vrcp.bf16.pop %v277
  %v290 = vmul.bf16 1065369472, %v289
  %v291 = vrcp.bf16.pop %v278
  %v292 = vmul.bf16 1065369472, %v291
  %v293 = vrcp.bf16.pop %v279
  %v294 = vmul.bf16 1065369472, %v293
  %v295 = vrcp.bf16.pop %v280
  %v296 = vmul.bf16 1065369472, %v295
  %v297 = vunpack.c.l.bf16 %v282
  %v298 = vunpack.c.h.bf16 %v282
  %v299 = vunpack.c.l.bf16 %v284
  %v300 = vunpack.c.h.bf16 %v284
  %v301 = vunpack.c.l.bf16 %v286
  %v302 = vunpack.c.h.bf16 %v286
  %v303 = vunpack.c.l.bf16 %v288
  %v304 = vunpack.c.h.bf16 %v288
  %v305 = vunpack.c.l.bf16 %v290
  %v306 = vunpack.c.h.bf16 %v290
  %v307 = vunpack.c.l.bf16 %v292
  %v308 = vunpack.c.h.bf16 %v292
  %v309 = vunpack.c.l.bf16 %v294
  %v310 = vunpack.c.h.bf16 %v294
  %v311 = vunpack.c.l.bf16 %v296
  %v312 = vunpack.c.h.bf16 %v296
  %v313 = vmul.f32 %v171, %v297
  %v314 = vmul.f32 %v174, %v298
  %v315 = vmul.f32 %v179, %v299
  %v316 = vmul.f32 %v182, %v300
  %v317 = vmul.f32 %v187, %v301
  %v318 = vmul.f32 %v190, %v302
  %v319 = vmul.f32 %v195, %v303
  %v320 = vmul.f32 %v198, %v304
  %v321 = vmul.f32 %v203, %v305
  %v322 = vmul.f32 %v206, %v306
  %v323 = vmul.f32 %v211, %v307
  %v324 = vmul.f32 %v214, %v308
  %v325 = vmul.f32 %v219, %v309
  %v326 = vmul.f32 %v222, %v310
  %v327 = vmul.f32 %v227, %v311
  %v328 = vmul.f32 %v230, %v312
  %v329 = vpack.c.bf16 %v314, %v313
  %v330 = vpack.c.bf16 %v316, %v315
  %v331 = vpack.c.bf16 %v318, %v317
  %v332 = vpack.c.bf16 %v320, %v319
  %v333 = vpack.c.bf16 %v322, %v321
  %v334 = vpack.c.bf16 %v324, %v323
  %v335 = vpack.c.bf16 %v326, %v325
  %v336 = vpack.c.bf16 %v328, %v327
  %v337 = vld [vmem:[%s4] sm:$0xf]
  %v338 = vld [vmem:[%s4 + $0x4] sm:$0xf]
  %v339 = vld [vmem:[%s5] sm:$0x1]
  %v341 = vlaneseq
  %v342 = vshrl.u32 %v341, 7
  %v343 = vsub.s32 0, %v342
  %v344 = vrot.slane %v339, %v343
  %v348 = vunpack.c.l.b16 %v337
  %v349 = vunpack.c.l.b16 %v338
  %v350 = vpack.c.b16 %v349, %v348
  %vm352 = vcmask 130048
  %v354 = vsel %vm352, %v329, 0
  %v357 = vsel %vm352, %v330, 0
  %v360 = vsel %vm352, %v331, 0
  %v363 = vsel %vm352, %v332, 0
  %v366 = vsel %vm352, %v333, 0
  %v369 = vsel %vm352, %v334, 0
  %v372 = vsel %vm352, %v335, 0
  %v375 = vsel %vm352, %v336, 0
  %377 = vmatprep.subr.bf16.mxu0 0
  %378 = vmatpush1.bf16.msra.mxu0 %v350
  %379 = vmatprep.subr.bf16.mxu0 0
  %380 = vmatpush1.bf16.msra.mxu0 0
  %381 = vmatprep.subr.bf16.mxu0 0
  %382 = vmatpush1.bf16.msra.mxu0 0
  %383 = vmatprep.subr.bf16.mxu0 0
  %384 = vmatpush1.bf16.msra.mxu0 0
  %385 = vmatprep.subr.bf16.mxu0 0
  %386 = vmatpush1.bf16.msra.mxu0 0
  %387 = vmatprep.subr.bf16.mxu0 0
  %388 = vmatpush1.bf16.msra.mxu0 0
  %389 = vmatprep.subr.bf16.mxu0 0
  %390 = vmatpush1.bf16.msra.mxu0 0
  %391 = vmatprep.subr.bf16.mxu0 0
  %392 = vmatpush1.bf16.msra.mxu0 0
  %393 = vmatprep.subr.bf16.mxu0 0
  %394 = vmatpush1.bf16.msra.mxu0 0
  %395 = vmatprep.subr.bf16.mxu0 0
  %396 = vmatpush1.bf16.msra.mxu0 0
  %397 = vmatprep.subr.bf16.mxu0 0
  %398 = vmatpush1.bf16.msra.mxu0 0
  %399 = vmatprep.subr.bf16.mxu0 0
  %400 = vmatpush1.bf16.msra.mxu0 0
  %401 = vmatprep.subr.bf16.mxu0 0
  %402 = vmatpush1.bf16.msra.mxu0 0
  %403 = vmatprep.subr.bf16.mxu0 0
  %404 = vmatpush1.bf16.msra.mxu0 0
  %405 = vmatprep.subr.bf16.mxu0 0
  %406 = vmatpush1.bf16.msra.mxu0 0
  %407 = vmatprep.subr.bf16.mxu0 0
  %408 = vmatpush1.bf16.msra.mxu0 0
  %409 = vmatprep.mubr.bf16.mxu0 0
  %410 = vmatmul.mubr.bf16.gmra.mrb[0].mxu0 %v354
  %v411 = vpop.f32.mrb[0].mxu0
  %v412 = vadd.f32 %v344, %v411
  %v413 = vpop.f32.mrb[0].mxu0
  %v414 = vpop.f32.mrb[0].mxu0
  %v415 = vadd.f32 %v344, %v414
  %v416 = vpop.f32.mrb[0].mxu0
  %417 = vmatprep.mubr.bf16.mxu0 0
  %418 = vmatmul.mubr.bf16.gmra.mrb[0].mxu0 %v357
  %v419 = vpop.f32.mrb[0].mxu0
  %v420 = vadd.f32 %v344, %v419
  %v421 = vpop.f32.mrb[0].mxu0
  %v422 = vpop.f32.mrb[0].mxu0
  %v423 = vadd.f32 %v344, %v422
  %v424 = vpop.f32.mrb[0].mxu0
  %425 = vmatprep.mubr.bf16.mxu0 0
  %426 = vmatmul.mubr.bf16.gmra.mrb[0].mxu0 %v360
  %v427 = vpop.f32.mrb[0].mxu0
  %v428 = vadd.f32 %v344, %v427
  %v429 = vpop.f32.mrb[0].mxu0
  %v430 = vpop.f32.mrb[0].mxu0
  %v431 = vadd.f32 %v344, %v430
  %v432 = vpop.f32.mrb[0].mxu0
  %433 = vmatprep.mubr.bf16.mxu0 0
  %434 = vmatmul.mubr.bf16.gmra.mrb[0].mxu0 %v363
  %v435 = vpop.f32.mrb[0].mxu0
  %v436 = vadd.f32 %v344, %v435
  %v437 = vpop.f32.mrb[0].mxu0
  %v438 = vpop.f32.mrb[0].mxu0
  %v439 = vadd.f32 %v344, %v438
  %v440 = vpop.f32.mrb[0].mxu0
  %441 = vmatprep.mubr.bf16.mxu0 0
  %442 = vmatmul.mubr.bf16.gmra.mrb[0].mxu0 %v366
  %v443 = vpop.f32.mrb[0].mxu0
  %v444 = vadd.f32 %v344, %v443
  %v445 = vpop.f32.mrb[0].mxu0
  %v446 = vpop.f32.mrb[0].mxu0
  %v447 = vadd.f32 %v344, %v446
  %v448 = vpop.f32.mrb[0].mxu0
  %449 = vmatprep.mubr.bf16.mxu0 0
  %450 = vmatmul.mubr.bf16.gmra.mrb[0].mxu0 %v369
  %v451 = vpop.f32.mrb[0].mxu0
  %v452 = vadd.f32 %v344, %v451
  %v453 = vpop.f32.mrb[0].mxu0
  %v454 = vpop.f32.mrb[0].mxu0
  %v455 = vadd.f32 %v344, %v454
  %v456 = vpop.f32.mrb[0].mxu0
  %457 = vmatprep.mubr.bf16.mxu0 0
  %458 = vmatmul.mubr.bf16.gmra.mrb[0].mxu0 %v372
  %v459 = vpop.f32.mrb[0].mxu0
  %v460 = vadd.f32 %v344, %v459
  %v461 = vpop.f32.mrb[0].mxu0
  %v462 = vpop.f32.mrb[0].mxu0
  %v463 = vadd.f32 %v344, %v462
  %v464 = vpop.f32.mrb[0].mxu0
  %465 = vmatprep.mubr.bf16.mxu0 0
  %466 = vmatmul.mubr.bf16.gmra.mrb[0].mxu0 %v375
  %v467 = vpop.f32.mrb[0].mxu0
  %v468 = vadd.f32 %v344, %v467
  %v469 = vpop.f32.mrb[0].mxu0
  %v470 = vpop.f32.mrb[0].mxu0
  %v471 = vadd.f32 %v344, %v470
  %v472 = vpop.f32.mrb[0].mxu0
  %473 = vdwg.mxu0
  %v474 = vpack.c.bf16 %v415, %v412
  %v475 = vpack.c.bf16 %v423, %v420
  %v476 = vpack.c.bf16 %v431, %v428
  %v477 = vpack.c.bf16 %v439, %v436
  %v478 = vpack.c.bf16 %v447, %v444
  %v479 = vpack.c.bf16 %v455, %v452
  %v480 = vpack.c.bf16 %v463, %v460
  %v481 = vpack.c.bf16 %v471, %v468
  %v482 = vxor.u32 %v474, 2147516416
  %v483 = vxor.u32 %v475, 2147516416
  %v484 = vxor.u32 %v476, 2147516416
  %v485 = vxor.u32 %v477, 2147516416
  %v486 = vxor.u32 %v478, 2147516416
  %v487 = vxor.u32 %v479, 2147516416
  %v488 = vxor.u32 %v480, 2147516416
  %v489 = vxor.u32 %v481, 2147516416
  %v491 = vmul.bf16 %v482, 1069105081
  %v492 = vpow.bf16.pop %v491
  %v494 = vmul.bf16 %v483, 1069105081
  %v495 = vpow.bf16.pop %v494
  %v497 = vmul.bf16 %v484, 1069105081
  %v498 = vpow.bf16.pop %v497
  %v500 = vmul.bf16 %v485, 1069105081
  %v501 = vpow.bf16.pop %v500
  %v503 = vmul.bf16 %v486, 1069105081
  %v504 = vpow.bf16.pop %v503
  %v506 = vmul.bf16 %v487, 1069105081
  %v507 = vpow.bf16.pop %v506
  %v509 = vmul.bf16 %v488, 1069105081
  %v510 = vpow.bf16.pop %v509
  %v512 = vmul.bf16 %v489, 1069105081
  %v513 = vpow.bf16.pop %v512
  %v514 = vadd.bf16 %v492, 1065369472
  %v515 = vadd.bf16 %v495, 1065369472
  %v516 = vadd.bf16 %v498, 1065369472
  %v517 = vadd.bf16 %v501, 1065369472
  %v518 = vadd.bf16 %v504, 1065369472
  %v519 = vadd.bf16 %v507, 1065369472
  %v520 = vadd.bf16 %v510, 1065369472
  %v521 = vadd.bf16 %v513, 1065369472
  %v522 = vrcp.bf16.pop %v514
  %v523 = vmul.bf16 1065369472, %v522
  %v524 = vrcp.bf16.pop %v515
  %v525 = vmul.bf16 1065369472, %v524
  %v526 = vrcp.bf16.pop %v516
  %v527 = vmul.bf16 1065369472, %v526
  %v528 = vrcp.bf16.pop %v517
  %v529 = vmul.bf16 1065369472, %v528
  %v530 = vrcp.bf16.pop %v518
  %v531 = vmul.bf16 1065369472, %v530
  %v532 = vrcp.bf16.pop %v519
  %v533 = vmul.bf16 1065369472, %v532
  %v534 = vrcp.bf16.pop %v520
  %v535 = vmul.bf16 1065369472, %v534
  %v536 = vrcp.bf16.pop %v521
  %v537 = vmul.bf16 1065369472, %v536
  %v538 = vunpack.c.l.bf16 %v523
  %v539 = vunpack.c.h.bf16 %v523
  %v540 = vunpack.c.l.bf16 %v525
  %v541 = vunpack.c.h.bf16 %v525
  %v542 = vunpack.c.l.bf16 %v527
  %v543 = vunpack.c.h.bf16 %v527
  %v544 = vunpack.c.l.bf16 %v529
  %v545 = vunpack.c.h.bf16 %v529
  %v546 = vunpack.c.l.bf16 %v531
  %v547 = vunpack.c.h.bf16 %v531
  %v548 = vunpack.c.l.bf16 %v533
  %v549 = vunpack.c.h.bf16 %v533
  %v550 = vunpack.c.l.bf16 %v535
  %v551 = vunpack.c.h.bf16 %v535
  %v552 = vunpack.c.l.bf16 %v537
  %v553 = vunpack.c.h.bf16 %v537
  %v554 = vmul.f32 %v412, %v538
  %v555 = vmul.f32 %v415, %v539
  %v556 = vmul.f32 %v420, %v540
  %v557 = vmul.f32 %v423, %v541
  %v558 = vmul.f32 %v428, %v542
  %v559 = vmul.f32 %v431, %v543
  %v560 = vmul.f32 %v436, %v544
  %v561 = vmul.f32 %v439, %v545
  %v562 = vmul.f32 %v444, %v546
  %v563 = vmul.f32 %v447, %v547
  %v564 = vmul.f32 %v452, %v548
  %v565 = vmul.f32 %v455, %v549
  %v566 = vmul.f32 %v460, %v550
  %v567 = vmul.f32 %v463, %v551
  %v568 = vmul.f32 %v468, %v552
  %v569 = vmul.f32 %v471, %v553
  %s570 = sld [smem:[#allocation2]]
  %v571 = vmax.f32 %v554, 1e-06
  %v572 = vmax.f32 %v555, 1e-06
  %v573 = vmax.f32 %v556, 1e-06
  %v574 = vmax.f32 %v557, 1e-06
  %v575 = vmax.f32 %v558, 1e-06
  %v576 = vmax.f32 %v559, 1e-06
  %v577 = vmax.f32 %v560, 1e-06
  %v578 = vmax.f32 %v561, 1e-06
  %v579 = vmax.f32 %v562, 1e-06
  %v580 = vmax.f32 %v563, 1e-06
  %v581 = vmax.f32 %v564, 1e-06
  %v582 = vmax.f32 %v565, 1e-06
  %v583 = vmax.f32 %v566, 1e-06
  %v584 = vmax.f32 %v567, 1e-06
  %v585 = vmax.f32 %v568, 1e-06
  %v586 = vmax.f32 %v569, 1e-06
  %v587 = vlog2.pop %v571
  %v588 = vmul.f32 %v587, 0.6931472
  %v589 = vlog2.pop %v572
  %v590 = vmul.f32 %v589, 0.6931472
  %v591 = vlog2.pop %v573
  %v592 = vmul.f32 %v591, 0.6931472
  %v593 = vlog2.pop %v574
  %v594 = vmul.f32 %v593, 0.6931472
  %v595 = vlog2.pop %v575
  %v596 = vmul.f32 %v595, 0.6931472
  %v597 = vlog2.pop %v576
  %v598 = vmul.f32 %v597, 0.6931472
  %v599 = vlog2.pop %v577
  %v600 = vmul.f32 %v599, 0.6931472
  %v601 = vlog2.pop %v578
  %v602 = vmul.f32 %v601, 0.6931472
  %v603 = vlog2.pop %v579
  %v604 = vmul.f32 %v603, 0.6931472
  %v605 = vlog2.pop %v580
  %v606 = vmul.f32 %v605, 0.6931472
  %v607 = vlog2.pop %v581
  %v608 = vmul.f32 %v607, 0.6931472
  %v609 = vlog2.pop %v582
  %v610 = vmul.f32 %v609, 0.6931472
  %v611 = vlog2.pop %v583
  %v612 = vmul.f32 %v611, 0.6931472
  %v613 = vlog2.pop %v584
  %v614 = vmul.f32 %v613, 0.6931472
  %v615 = vlog2.pop %v585
  %v616 = vmul.f32 %v615, 0.6931472
  %v617 = vlog2.pop %v586
  %v618 = vmul.f32 %v617, 0.6931472
  %v619 = vstv %s570
  %v620 = vmul.f32 %v619, %v588
  %v621 = vmul.f32 %v619, %v590
  %v622 = vmul.f32 %v619, %v592
  %v623 = vmul.f32 %v619, %v594
  %v624 = vmul.f32 %v619, %v596
  %v625 = vmul.f32 %v619, %v598
  %v626 = vmul.f32 %v619, %v600
  %v627 = vmul.f32 %v619, %v602
  %v628 = vmul.f32 %v619, %v604
  %v629 = vmul.f32 %v619, %v606
  %v630 = vmul.f32 %v619, %v608
  %v631 = vmul.f32 %v619, %v610
  %v632 = vmul.f32 %v619, %v612
  %v633 = vmul.f32 %v619, %v614
  %v634 = vmul.f32 %v619, %v616
  %v635 = vmul.f32 %v619, %v618
  %v636 = vmul.f32 %v620, 1.442695
  %v637 = vpow.pop %v636
  %v638 = vmul.f32 %v621, 1.442695
  %v639 = vpow.pop %v638
  %v640 = vmul.f32 %v622, 1.442695
  %v641 = vpow.pop %v640
  %v642 = vmul.f32 %v623, 1.442695
  %v643 = vpow.pop %v642
  %v644 = vmul.f32 %v624, 1.442695
  %v645 = vpow.pop %v644
  %v646 = vmul.f32 %v625, 1.442695
  %v647 = vpow.pop %v646
  %v648 = vmul.f32 %v626, 1.442695
  %v649 = vpow.pop %v648
  %v650 = vmul.f32 %v627, 1.442695
  %v651 = vpow.pop %v650
  %v652 = vmul.f32 %v628, 1.442695
  %v653 = vpow.pop %v652
  %v654 = vmul.f32 %v629, 1.442695
  %v655 = vpow.pop %v654
  %v656 = vmul.f32 %v630, 1.442695
  %v657 = vpow.pop %v656
  %v658 = vmul.f32 %v631, 1.442695
  %v659 = vpow.pop %v658
  %v660 = vmul.f32 %v632, 1.442695
  %v661 = vpow.pop %v660
  %v662 = vmul.f32 %v633, 1.442695
  %v663 = vpow.pop %v662
  %v664 = vmul.f32 %v634, 1.442695
  %v665 = vpow.pop %v664
  %v666 = vmul.f32 %v635, 1.442695
  %v667 = vpow.pop %v666
  %v668 = vadd.f32 %v637, %v639
  %v669 = vadd.f32 %v668, %v641
  %v670 = vadd.f32 %v669, %v643
  %v671 = vadd.f32 %v670, %v645
  %v672 = vadd.f32 %v671, %v647
  %v673 = vadd.f32 %v672, %v649
  %v674 = vadd.f32 %v673, %v651
  %v675 = vrot.slane %v674, 4
  %v676 = vadd.f32 %v674, %v675
  %v677 = vrot.slane %v676, 2
  %v678 = vadd.f32 %v676, %v677
  %v679 = vrot.slane %v678, 1
  %v680 = vadd.f32 %v678, %v679
  %v681 = vrcp.pop 64.0
  %v682 = vmul.f32 %v680, %v681
  %v683 = vlog2.pop %v682
  %v684 = vmul.f32 %v683, 0.6931472
  %v685 = vrcp.pop %v619
  %v686 = vmul.f32 %v684, %v685
  %v687 = vmul.f32 %v686, 1.442695
  %v688 = vpow.pop %v687
  %v689 = vadd.f32 %v653, %v655
  %v690 = vadd.f32 %v689, %v657
  %v691 = vadd.f32 %v690, %v659
  %v692 = vadd.f32 %v691, %v661
  %v693 = vadd.f32 %v692, %v663
  %v694 = vadd.f32 %v693, %v665
  %v695 = vadd.f32 %v694, %v667
  %v696 = vrot.slane %v695, 4
  %v697 = vadd.f32 %v695, %v696
  %v698 = vrot.slane %v697, 2
  %v699 = vadd.f32 %v697, %v698
  %v700 = vrot.slane %v699, 1
  %v701 = vadd.f32 %v699, %v700
  %v702 = vmul.f32 %v701, %v681
  %v703 = vlog2.pop %v702
  %v704 = vmul.f32 %v703, 0.6931472
  %v705 = vmul.f32 %v704, %v685
  %v706 = vmul.f32 %v705, 1.442695
  %v707 = vpow.pop %v706
  %vm708 = vcmask 1040384
  %v709 = vsel %vm708, %v688, %v707
  %710 = vst [vmem:[%s6] sm:$0x3] %v709
  // Predicated region
  $region26: #{forward.2} parent=0 // pred_check
    _
  $region27: #{forward.2} parent=0 // pred_check_branch
    %712 = sbr.rel (0) target = $region29
  $region28: #{forward.2} parent=0 // pred_region
    _
  $region29: #{forward.2} parent=0 // pred_fallthru
    _
  // Predicated region
  $region30: #{forward.2} parent=0 // pred_check
    _
  $region31: #{forward.2} parent=0 // pred_check_branch
    %714 = sbr.rel (0) target = $region33
  $region32: #{forward.2} parent=0 // pred_region
    _
  $region33: #{forward.2} parent=0 // pred_fallthru
    _

// kernel: forward.3
$region0: #{forward.3}
  #allocation0 [shape = 'u32[]', space=smem, size = 0x4, offset = 0x4, fixed_abs, tag = 'smem constant byte address 0x4 - core index']
  #allocation1 [shape = 'u32[144,128]{1,0:T(1,128)}', space=vmem, size = 0x12000, scoped, tag = 'internal scratch']
  %s0 = inlined_call_operand.vmem [shape: f32[2,128], index: 0, kind: input, shape index: {}]
  %s1 = inlined_call_operand.vmem [shape: f32[2,9], index: 1, kind: input, shape index: {}]
  %s2 = inlined_call_operand.vmem [shape: bf16[128,512], index: 2, kind: input, shape index: {}]
  %s3 = inlined_call_operand.vmem [shape: f32[1,512], index: 3, kind: input, shape index: {}]
  %s4 = inlined_call_operand.vmem [shape: bf16[9,512], index: 4, kind: input, shape index: {}]
  %s5 = inlined_call_operand.vmem [shape: f32[1,512], index: 5, kind: input, shape index: {}]
  %s6 = inlined_call_operand.vmem [shape: bf16[512,256], index: 6, kind: input, shape index: {}]
  %s7 = inlined_call_operand.vmem [shape: f32[1,256], index: 7, kind: input, shape index: {}]
  %s8 = inlined_call_operand.vmem [shape: bf16[512,128], index: 8, kind: input, shape index: {}]
  %s9 = inlined_call_operand.vmem [shape: bf16[256,128], index: 9, kind: input, shape index: {}]
  %s10 = inlined_call_operand.vmem [shape: f32[1,128], index: 10, kind: input, shape index: {}]
  %s11 = inlined_call_operand.hbm [shape: f32[2,128], index: 11, kind: output, shape index: {}]
  %s12 = sld [smem:[#allocation0]]
  $region54: #{forward.3} parent=0
    _
  %s14 = ssub.s32 1, %s12
  %s15 = scalar_select 0, %s14, %s12
  $region1: #{forward.3} parent=0
    #allocation2 [shape = 'u8[1024]{0}', space=vmem, size = 0x400, scoped, tag = 'output window, operand 0, single buffered']
    #allocation3 [shape = 's32[1]{0}', space=sflag, size = 0x4, scoped, tag = 'scoped memory for forward.3']
    %16 = vsyncpa [#allocation3], 0
    // Predicated region
    $region2: #{forward.3} parent=1 // pred_check
      _
    $region3: #{forward.3} parent=1 // pred_check_branch
      %18 = sbr.rel (0) target = $region5
    $region4: #{forward.3} parent=1 // pred_region
      _
    $region5: #{forward.3} parent=1 // pred_fallthru
      _
    // Predicated region
    $region6: #{forward.3} parent=1 // pred_check
      _
    $region7: #{forward.3} parent=1 // pred_check_branch
      %20 = sbr.rel (0) target = $region9
    $region8: #{forward.3} parent=1 // pred_region
      _
    $region9: #{forward.3} parent=1 // pred_fallthru
      _
    // Predicated region
    $region10: #{forward.3} parent=1 // pred_check
      _
    $region11: #{forward.3} parent=1 // pred_check_branch
      %22 = sbr.rel (0) target = $region13
    $region12: #{forward.3} parent=1 // pred_region
      _
    $region13: #{forward.3} parent=1 // pred_fallthru
      _
    // Predicated region
    $region14: #{forward.3} parent=1 // pred_check
      _
    $region15: #{forward.3} parent=1 // pred_check_branch
      %24 = sbr.rel (0) target = $region17
    $region16: #{forward.3} parent=1 // pred_region
      _
    $region17: #{forward.3} parent=1 // pred_fallthru
      _
    // Predicated region
    $region18: #{forward.3} parent=1 // pred_check
      _
    $region19: #{forward.3} parent=1 // pred_check_branch
      %26 = sbr.rel (0) target = $region21
    $region20: #{forward.3} parent=1 // pred_region
      _
    $region21: #{forward.3} parent=1 // pred_fallthru
      _
    // Predicated region
    $region22: #{forward.3} parent=1 // pred_check
      _
    $region23: #{forward.3} parent=1 // pred_check_branch
      %28 = sbr.rel (0) target = $region25
    $region24: #{forward.3} parent=1 // pred_region
      _
    $region25: #{forward.3} parent=1 // pred_fallthru
      _
    // Predicated region
    $region26: #{forward.3} parent=1 // pred_check
      _
    $region27: #{forward.3} parent=1 // pred_check_branch
      %30 = sbr.rel (0) target = $region29
    $region28: #{forward.3} parent=1 // pred_region
      _
    $region29: #{forward.3} parent=1 // pred_fallthru
      _
    // Predicated region
    $region30: #{forward.3} parent=1 // pred_check
      _
    $region31: #{forward.3} parent=1 // pred_check_branch
      %32 = sbr.rel (0) target = $region33
    $region32: #{forward.3} parent=1 // pred_region
      _
    $region33: #{forward.3} parent=1 // pred_fallthru
      _
    // Predicated region
    $region34: #{forward.3} parent=1 // pred_check
      _
    $region35: #{forward.3} parent=1 // pred_check_branch
      %34 = sbr.rel (0) target = $region37
    $region36: #{forward.3} parent=1 // pred_region
      _
    $region37: #{forward.3} parent=1 // pred_fallthru
      _
    // Predicated region
    $region38: #{forward.3} parent=1 // pred_check
      _
    $region39: #{forward.3} parent=1 // pred_check_branch
      %36 = sbr.rel (0) target = $region41
    $region40: #{forward.3} parent=1 // pred_region
      _
    $region41: #{forward.3} parent=1 // pred_fallthru
      _
    // Predicated region
    $region42: #{forward.3} parent=1 // pred_check
      _
    $region43: #{forward.3} parent=1 // pred_check_branch
      %38 = sbr.rel (0) target = $region45
    $region44: #{forward.3} parent=1 // pred_region
      _
    $region45: #{forward.3} parent=1 // pred_fallthru
      _
    %v40 = vld [vmem:[%s0] sm:$0x3]
    %v41 = vpack.c.bf16 %v40, %v40
    %v42 = vld [vmem:[%s2] sm:$0xff]
    %v43 = vld [vmem:[%s2 + $0x8] sm:$0xff]
    %v44 = vld [vmem:[%s2 + $0x10] sm:$0xff]
    %v45 = vld [vmem:[%s2 + $0x18] sm:$0xff]
    %v46 = vld [vmem:[%s2 + $0x20] sm:$0xff]
    %v47 = vld [vmem:[%s2 + $0x28] sm:$0xff]
    %v48 = vld [vmem:[%s2 + $0x30] sm:$0xff]
    %v49 = vld [vmem:[%s2 + $0x38] sm:$0xff]
    %v50 = vld [vmem:[%s2 + $0x40] sm:$0xff]
    %v51 = vld [vmem:[%s2 + $0x48] sm:$0xff]
    %v52 = vld [vmem:[%s2 + $0x50] sm:$0xff]
    %v53 = vld [vmem:[%s2 + $0x58] sm:$0xff]
    %v54 = vld [vmem:[%s2 + $0x60] sm:$0xff]
    %v55 = vld [vmem:[%s2 + $0x68] sm:$0xff]
    %v56 = vld [vmem:[%s2 + $0x70] sm:$0xff]
    %v57 = vld [vmem:[%s2 + $0x78] sm:$0xff]
    %v58 = vld [vmem:[%s2 + $0x80] sm:$0xff]
    %v59 = vld [vmem:[%s2 + $0x88] sm:$0xff]
    %v60 = vld [vmem:[%s2 + $0x90] sm:$0xff]
    %v61 = vld [vmem:[%s2 + $0x98] sm:$0xff]
    %v62 = vld [vmem:[%s2 + $0xa0] sm:$0xff]
    %v63 = vld [vmem:[%s2 + $0xa8] sm:$0xff]
    %v64 = vld [vmem:[%s2 + $0xb0] sm:$0xff]
    %v65 = vld [vmem:[%s2 + $0xb8] sm:$0xff]
    %v66 = vld [vmem:[%s2 + $0xc0] sm:$0xff]
    %v67 = vld [vmem:[%s2 + $0xc8] sm:$0xff]
    %v68 = vld [vmem:[%s2 + $0xd0] sm:$0xff]
    %v69 = vld [vmem:[%s2 + $0xd8] sm:$0xff]
    %v70 = vld [vmem:[%s2 + $0xe0] sm:$0xff]
    %v71 = vld [vmem:[%s2 + $0xe8] sm:$0xff]
    %v72 = vld [vmem:[%s2 + $0xf0] sm:$0xff]
    %v73 = vld [vmem:[%s2 + $0xf8] sm:$0xff]
    %v74 = vld [vmem:[%s3] sm:$0xf]
    %v76 = vlaneseq
    %v77 = vshrl.u32 %v76, 7
    %v78 = vsub.s32 0, %v77
    %v79 = vrot.slane %v74, %v78
    %v80 = vlaneseq
    %v81 = vshrl.u32 %v80, 7
    %v82 = vsub.s32 1, %v81
    %v83 = vrot.slane %v74, %v82
    %v84 = vlaneseq
    %v85 = vshrl.u32 %v84, 7
    %v86 = vsub.s32 2, %v85
    %v87 = vrot.slane %v74, %v86
    %v88 = vlaneseq
    %v89 = vshrl.u32 %v88, 7
    %v90 = vsub.s32 3, %v89
    %v91 = vrot.slane %v74, %v90
    %v128 = vunpack.c.l.b16 %v42
    %v129 = vunpack.c.h.b16 %v42
    %v130 = vunpack.c.l.b16 %v43
    %v131 = vunpack.c.h.b16 %v43
    %v132 = vunpack.c.l.b16 %v44
    %v133 = vunpack.c.h.b16 %v44
    %v134 = vunpack.c.l.b16 %v45
    %v135 = vunpack.c.h.b16 %v45
    %v136 = vunpack.c.l.b16 %v46
    %v137 = vunpack.c.h.b16 %v46
    %v138 = vunpack.c.l.b16 %v47
    %v139 = vunpack.c.h.b16 %v47
    %v140 = vunpack.c.l.b16 %v48
    %v141 = vunpack.c.h.b16 %v48
    %v142 = vunpack.c.l.b16 %v49
    %v143 = vunpack.c.h.b16 %v49
    %v144 = vunpack.c.l.b16 %v50
    %v145 = vunpack.c.h.b16 %v50
    %v146 = vunpack.c.l.b16 %v51
    %v147 = vunpack.c.h.b16 %v51
    %v148 = vunpack.c.l.b16 %v52
    %v149 = vunpack.c.h.b16 %v52
    %v150 = vunpack.c.l.b16 %v53
    %v151 = vunpack.c.h.b16 %v53
    %v152 = vunpack.c.l.b16 %v54
    %v153 = vunpack.c.h.b16 %v54
    %v154 = vunpack.c.l.b16 %v55
    %v155 = vunpack.c.h.b16 %v55
    %v156 = vunpack.c.l.b16 %v56
    %v157 = vunpack.c.h.b16 %v56
    %v158 = vunpack.c.l.b16 %v57
    %v159 = vunpack.c.h.b16 %v57
    %v160 = vunpack.c.l.b16 %v58
    %v161 = vunpack.c.h.b16 %v58
    %v162 = vunpack.c.l.b16 %v59
    %v163 = vunpack.c.h.b16 %v59
    %v164 = vunpack.c.l.b16 %v60
    %v165 = vunpack.c.h.b16 %v60
    %v166 = vunpack.c.l.b16 %v61
    %v167 = vunpack.c.h.b16 %v61
    %v168 = vunpack.c.l.b16 %v62
    %v169 = vunpack.c.h.b16 %v62
    %v170 = vunpack.c.l.b16 %v63
    %v171 = vunpack.c.h.b16 %v63
    %v172 = vunpack.c.l.b16 %v64
    %v173 = vunpack.c.h.b16 %v64
    %v174 = vunpack.c.l.b16 %v65
    %v175 = vunpack.c.h.b16 %v65
    %v176 = vunpack.c.l.b16 %v66
    %v177 = vunpack.c.h.b16 %v66
    %v178 = vunpack.c.l.b16 %v67
    %v179 = vunpack.c.h.b16 %v67
    %v180 = vunpack.c.l.b16 %v68
    %v181 = vunpack.c.h.b16 %v68
    %v182 = vunpack.c.l.b16 %v69
    %v183 = vunpack.c.h.b16 %v69
    %v184 = vunpack.c.l.b16 %v70
    %v185 = vunpack.c.h.b16 %v70
    %v186 = vunpack.c.l.b16 %v71
    %v187 = vunpack.c.h.b16 %v71
    %v188 = vunpack.c.l.b16 %v72
    %v189 = vunpack.c.h.b16 %v72
    %v190 = vunpack.c.l.b16 %v73
    %v191 = vunpack.c.h.b16 %v73
    %v192 = vpack.c.b16 %v132, %v128
    %v193 = vpack.c.b16 %v133, %v129
    %v194 = vpack.c.b16 %v134, %v130
    %v195 = vpack.c.b16 %v135, %v131
    %v196 = vpack.c.b16 %v140, %v136
    %v197 = vpack.c.b16 %v141, %v137
    %v198 = vpack.c.b16 %v142, %v138
    %v199 = vpack.c.b16 %v143, %v139
    %v200 = vpack.c.b16 %v148, %v144
    %v201 = vpack.c.b16 %v149, %v145
    %v202 = vpack.c.b16 %v150, %v146
    %v203 = vpack.c.b16 %v151, %v147
    %v204 = vpack.c.b16 %v156, %v152
    %v205 = vpack.c.b16 %v157, %v153
    %v206 = vpack.c.b16 %v158, %v154
    %v207 = vpack.c.b16 %v159, %v155
    %v208 = vpack.c.b16 %v164, %v160
    %v209 = vpack.c.b16 %v165, %v161
    %v210 = vpack.c.b16 %v166, %v162
    %v211 = vpack.c.b16 %v167, %v163
    %v212 = vpack.c.b16 %v172, %v168
    %v213 = vpack.c.b16 %v173, %v169
    %v214 = vpack.c.b16 %v174, %v170
    %v215 = vpack.c.b16 %v175, %v171
    %v216 = vpack.c.b16 %v180, %v176
    %v217 = vpack.c.b16 %v181, %v177
    %v218 = vpack.c.b16 %v182, %v178
    %v219 = vpack.c.b16 %v183, %v179
    %v220 = vpack.c.b16 %v188, %v184
    %v221 = vpack.c.b16 %v189, %v185
    %v222 = vpack.c.b16 %v190, %v186
    %v223 = vpack.c.b16 %v191, %v187
    %256 = vmatprep.subr.bf16.mxu0 %v193
    %257 = vmatpush1.bf16.msra.mxu0 %v192
    %258 = vmatprep.subr.bf16.mxu0 %v197
    %259 = vmatpush1.bf16.msra.mxu0 %v196
    %260 = vmatprep.subr.bf16.mxu0 %v201
    %261 = vmatpush1.bf16.msra.mxu0 %v200
    %262 = vmatprep.subr.bf16.mxu0 %v205
    %263 = vmatpush1.bf16.msra.mxu0 %v204
    %264 = vmatprep.subr.bf16.mxu0 %v209
    %265 = vmatpush1.bf16.msra.mxu0 %v208
    %266 = vmatprep.subr.bf16.mxu0 %v213
    %267 = vmatpush1.bf16.msra.mxu0 %v212
    %268 = vmatprep.subr.bf16.mxu0 %v217
    %269 = vmatpush1.bf16.msra.mxu0 %v216
    %270 = vmatprep.subr.bf16.mxu0 %v221
    %271 = vmatpush1.bf16.msra.mxu0 %v220
    %272 = vmatprep.subr.bf16.mxu0 0
    %273 = vmatpush1.bf16.msra.mxu0 0
    %274 = vmatprep.subr.bf16.mxu0 0
    %275 = vmatpush1.bf16.msra.mxu0 0
    %276 = vmatprep.subr.bf16.mxu0 0
    %277 = vmatpush1.bf16.msra.mxu0 0
    %278 = vmatprep.subr.bf16.mxu0 0
    %279 = vmatpush1.bf16.msra.mxu0 0
    %280 = vmatprep.subr.bf16.mxu0 0
    %281 = vmatpush1.bf16.msra.mxu0 0
    %282 = vmatprep.subr.bf16.mxu0 0
    %283 = vmatpush1.bf16.msra.mxu0 0
    %284 = vmatprep.subr.bf16.mxu0 0
    %285 = vmatpush1.bf16.msra.mxu0 0
    %286 = vmatprep.subr.bf16.mxu0 0
    %287 = vmatpush1.bf16.msra.mxu0 0
    %288 = vmatprep.mubr.bf16.mxu0 0
    %289 = vmatmul.mubr.bf16.gmra.mrb[0].mxu0 %v41
    %v290 = vpop.f32.mrb[0].mxu0
    %v291 = vadd.f32 %v79, %v290
    %v292 = vpop.f32.mrb[0].mxu0
    %v293 = vadd.f32 %v83, %v292
    %v294 = vpop.f32.mrb[0].mxu0
    %v295 = vpop.f32.mrb[0].mxu0
    %296 = vdwg.mxu0
    %297 = vmatprep.subr.bf16.mxu0 %v195
    %298 = vmatpush1.bf16.msra.mxu0 %v194
    %299 = vmatprep.subr.bf16.mxu0 %v199
    %300 = vmatpush1.bf16.msra.mxu0 %v198
    %301 = vmatprep.subr.bf16.mxu0 %v203
    %302 = vmatpush1.bf16.msra.mxu0 %v202
    %303 = vmatprep.subr.bf16.mxu0 %v207
    %304 = vmatpush1.bf16.msra.mxu0 %v206
    %305 = vmatprep.subr.bf16.mxu0 %v211
    %306 = vmatpush1.bf16.msra.mxu0 %v210
    %307 = vmatprep.subr.bf16.mxu0 %v215
    %308 = vmatpush1.bf16.msra.mxu0 %v214
    %309 = vmatprep.subr.bf16.mxu0 %v219
    %310 = vmatpush1.bf16.msra.mxu0 %v218
    %311 = vmatprep.subr.bf16.mxu0 %v223
    %312 = vmatpush1.bf16.msra.mxu0 %v222
    %313 = vmatprep.subr.bf16.mxu0 0
    %314 = vmatpush1.bf16.msra.mxu0 0
    %315 = vmatprep.subr.bf16.mxu0 0
    %316 = vmatpush1.bf16.msra.mxu0 0
    %317 = vmatprep.subr.bf16.mxu0 0
    %318 = vmatpush1.bf16.msra.mxu0 0
    %319 = vmatprep.subr.bf16.mxu0 0
    %320 = vmatpush1.bf16.msra.mxu0 0
    %321 = vmatprep.subr.bf16.mxu0 0
    %322 = vmatpush1.bf16.msra.mxu0 0
    %323 = vmatprep.subr.bf16.mxu0 0
    %324 = vmatpush1.bf16.msra.mxu0 0
    %325 = vmatprep.subr.bf16.mxu0 0
    %326 = vmatpush1.bf16.msra.mxu0 0
    %327 = vmatprep.subr.bf16.mxu0 0
    %328 = vmatpush1.bf16.msra.mxu0 0
    %329 = vmatprep.mubr.bf16.mxu0 0
    %330 = vmatmul.mubr.bf16.gmra.mrb[0].mxu0 %v41
    %v331 = vpop.f32.mrb[0].mxu0
    %v332 = vadd.f32 %v87, %v331
    %v333 = vpop.f32.mrb[0].mxu0
    %v334 = vadd.f32 %v91, %v333
    %v335 = vpop.f32.mrb[0].mxu0
    %v336 = vpop.f32.mrb[0].mxu0
    %337 = vdwg.mxu0
    %v338 = vld [vmem:[%s1] sm:$0x3]
    %v339 = vpack.c.bf16 %v338, %v338
    %v340 = vld [vmem:[%s4] sm:$0xff]
    %v341 = vld [vmem:[%s4 + $0x8] sm:$0xff]
    %v342 = vld [vmem:[%s4 + $0x10] sm:$0x11]
    %v343 = vld [vmem:[%s4 + $0x18] sm:$0x11]
    %v344 = vld [vmem:[%s5] sm:$0xf]
    %v346 = vlaneseq
    %v347 = vshrl.u32 %v346, 7
    %v348 = vsub.s32 0, %v347
    %v349 = vrot.slane %v344, %v348
    %v350 = vlaneseq
    %v351 = vshrl.u32 %v350, 7
    %v352 = vsub.s32 1, %v351
    %v353 = vrot.slane %v344, %v352
    %v354 = vlaneseq
    %v355 = vshrl.u32 %v354, 7
    %v356 = vsub.s32 2, %v355
    %v357 = vrot.slane %v344, %v356
    %v358 = vlaneseq
    %v359 = vshrl.u32 %v358, 7
    %v360 = vsub.s32 3, %v359
    %v361 = vrot.slane %v344, %v360
    %v370 = vunpack.c.l.b16 %v340
    %v371 = vunpack.c.h.b16 %v340
    %v372 = vunpack.c.l.b16 %v341
    %v373 = vunpack.c.h.b16 %v341
    %v374 = vunpack.c.l.b16 %v342
    %v375 = vunpack.c.h.b16 %v342
    %v376 = vunpack.c.l.b16 %v343
    %v377 = vunpack.c.h.b16 %v343
    %v378 = vpack.c.b16 %v374, %v370
    %v379 = vpack.c.b16 %v375, %v371
    %v380 = vpack.c.b16 %v376, %v372
    %v381 = vpack.c.b16 %v377, %v373
    %vm382 = vcmask 72704
    %v384 = vsel %vm382, %v339, 0
    %vm386 = vcmask 1043456
    %vm387 = vcmask 1044480
    %v388 = vsel %vm386, 4294967295, 65535
    %v389 = vsel %vm387, %v388, 0
    %v391 = vand.u32 %v378, %v389
    %v394 = vand.u32 %v379, %v389
    %v397 = vand.u32 %v380, %v389
    %v400 = vand.u32 %v381, %v389
    %402 = vmatprep.subr.bf16.mxu0 %v394
    %403 = vmatpush1.bf16.msra.mxu0 %v391
    %404 = vmatprep.subr.bf16.mxu0 0
    %405 = vmatpush1.bf16.msra.mxu0 0
    %406 = vmatprep.subr.bf16.mxu0 0
    %407 = vmatpush1.bf16.msra.mxu0 0
    %408 = vmatprep.subr.bf16.mxu0 0
    %409 = vmatpush1.bf16.msra.mxu0 0
    %410 = vmatprep.subr.bf16.mxu0 0
    %411 = vmatpush1.bf16.msra.mxu0 0
    %412 = vmatprep.subr.bf16.mxu0 0
    %413 = vmatpush1.bf16.msra.mxu0 0
    %414 = vmatprep.subr.bf16.mxu0 0
    %415 = vmatpush1.bf16.msra.mxu0 0
    %416 = vmatprep.subr.bf16.mxu0 0
    %417 = vmatpush1.bf16.msra.mxu0 0
    %418 = vmatprep.subr.bf16.mxu0 0
    %419 = vmatpush1.bf16.msra.mxu0 0
    %420 = vmatprep.subr.bf16.mxu0 0
    %421 = vmatpush1.bf16.msra.mxu0 0
    %422 = vmatprep.subr.bf16.mxu0 0
    %423 = vmatpush1.bf16.msra.mxu0 0
    %424 = vmatprep.subr.bf16.mxu0 0
    %425 = vmatpush1.bf16.msra.mxu0 0
    %426 = vmatprep.subr.bf16.mxu0 0
    %427 = vmatpush1.bf16.msra.mxu0 0
    %428 = vmatprep.subr.bf16.mxu0 0
    %429 = vmatpush1.bf16.msra.mxu0 0
    %430 = vmatprep.subr.bf16.mxu0 0
    %431 = vmatpush1.bf16.msra.mxu0 0
    %432 = vmatprep.subr.bf16.mxu0 0
    %433 = vmatpush1.bf16.msra.mxu0 0
    %434 = vmatprep.mubr.bf16.mxu0 0
    %435 = vmatmul.mubr.bf16.gmra.mrb[0].mxu0 %v384
    %v436 = vpop.f32.mrb[0].mxu0
    %v437 = vadd.f32 %v349, %v436
    %v438 = vpop.f32.mrb[0].mxu0
    %v439 = vadd.f32 %v353, %v438
    %v440 = vpop.f32.mrb[0].mxu0
    %v441 = vpop.f32.mrb[0].mxu0
    %442 = vdwg.mxu0
    %443 = vmatprep.subr.bf16.mxu0 %v400
    %444 = vmatpush1.bf16.msra.mxu0 %v397
    %445 = vmatprep.subr.bf16.mxu0 0
    %446 = vmatpush1.bf16.msra.mxu0 0
    %447 = vmatprep.subr.bf16.mxu0 0
    %448 = vmatpush1.bf16.msra.mxu0 0
    %449 = vmatprep.subr.bf16.mxu0 0
    %450 = vmatpush1.bf16.msra.mxu0 0
    %451 = vmatprep.subr.bf16.mxu0 0
    %452 = vmatpush1.bf16.msra.mxu0 0
    %453 = vmatprep.subr.bf16.mxu0 0
    %454 = vmatpush1.bf16.msra.mxu0 0
    %455 = vmatprep.subr.bf16.mxu0 0
    %456 = vmatpush1.bf16.msra.mxu0 0
    %457 = vmatprep.subr.bf16.mxu0 0
    %458 = vmatpush1.bf16.msra.mxu0 0
    %459 = vmatprep.subr.bf16.mxu0 0
    %460 = vmatpush1.bf16.msra.mxu0 0
    %461 = vmatprep.subr.bf16.mxu0 0
    %462 = vmatpush1.bf16.msra.mxu0 0
    %463 = vmatprep.subr.bf16.mxu0 0
    %464 = vmatpush1.bf16.msra.mxu0 0
    %465 = vmatprep.subr.bf16.mxu0 0
    %466 = vmatpush1.bf16.msra.mxu0 0
    %467 = vmatprep.subr.bf16.mxu0 0
    %468 = vmatpush1.bf16.msra.mxu0 0
    %469 = vmatprep.subr.bf16.mxu0 0
    %470 = vmatpush1.bf16.msra.mxu0 0
    %471 = vmatprep.subr.bf16.mxu0 0
    %472 = vmatpush1.bf16.msra.mxu0 0
    %473 = vmatprep.subr.bf16.mxu0 0
    %474 = vmatpush1.bf16.msra.mxu0 0
    %475 = vmatprep.mubr.bf16.mxu0 0
    %476 = vmatmul.mubr.bf16.gmra.mrb[0].mxu0 %v384
    %v477 = vpop.f32.mrb[0].mxu0
    %v478 = vadd.f32 %v357, %v477
    %v479 = vpop.f32.mrb[0].mxu0
    %v480 = vadd.f32 %v361, %v479
    %v481 = vpop.f32.mrb[0].mxu0
    %v482 = vpop.f32.mrb[0].mxu0
    %483 = vdwg.mxu0
    %v484 = vmax.f32 %v437, 0.0
    %v485 = vmax.f32 %v439, 0.0
    %v486 = vmax.f32 %v478, 0.0
    %v487 = vmax.f32 %v480, 0.0
    %v488 = vpack.c.bf16 %v484, %v484
    %v489 = vpack.c.bf16 %v485, %v485
    %v490 = vpack.c.bf16 %v486, %v486
    %v491 = vpack.c.bf16 %v487, %v487
    %v492 = vld [vmem:[%s6] sm:$0xff]
    %v493 = vld [vmem:[%s6 + $0x8] sm:$0xff]
    %v494 = vld [vmem:[%s6 + $0x10] sm:$0xff]
    %v495 = vld [vmem:[%s6 + $0x18] sm:$0xff]
    %v496 = vld [vmem:[%s6 + $0x20] sm:$0xff]
    %v497 = vld [vmem:[%s6 + $0x28] sm:$0xff]
    %v498 = vld [vmem:[%s6 + $0x30] sm:$0xff]
    %v499 = vld [vmem:[%s6 + $0x38] sm:$0xff]
    %v500 = vld [vmem:[%s6 + $0x40] sm:$0xff]
    %v501 = vld [vmem:[%s6 + $0x48] sm:$0xff]
    %v502 = vld [vmem:[%s6 + $0x50] sm:$0xff]
    %v503 = vld [vmem:[%s6 + $0x58] sm:$0xff]
    %v504 = vld [vmem:[%s6 + $0x60] sm:$0xff]
    %v505 = vld [vmem:[%s6 + $0x68] sm:$0xff]
    %v506 = vld [vmem:[%s6 + $0x70] sm:$0xff]
    %v507 = vld [vmem:[%s6 + $0x78] sm:$0xff]
    %v508 = vld [vmem:[%s6 + $0x80] sm:$0xff]
    %v509 = vld [vmem:[%s6 + $0x88] sm:$0xff]
    %v510 = vld [vmem:[%s6 + $0x90] sm:$0xff]
    %v511 = vld [vmem:[%s6 + $0x98] sm:$0xff]
    %v512 = vld [vmem:[%s6 + $0xa0] sm:$0xff]
    %v513 = vld [vmem:[%s6 + $0xa8] sm:$0xff]
    %v514 = vld [vmem:[%s6 + $0xb0] sm:$0xff]
    %v515 = vld [vmem:[%s6 + $0xb8] sm:$0xff]
    %v516 = vld [vmem:[%s6 + $0xc0] sm:$0xff]
    %v517 = vld [vmem:[%s6 + $0xc8] sm:$0xff]
    %v518 = vld [vmem:[%s6 + $0xd0] sm:$0xff]
    %v519 = vld [vmem:[%s6 + $0xd8] sm:$0xff]
    %v520 = vld [vmem:[%s6 + $0xe0] sm:$0xff]
    %v521 = vld [vmem:[%s6 + $0xe8] sm:$0xff]
    %v522 = vld [vmem:[%s6 + $0xf0] sm:$0xff]
    %v523 = vld [vmem:[%s6 + $0xf8] sm:$0xff]
    %v524 = vld [vmem:[%s6 + $0x100] sm:$0xff]
    %v525 = vld [vmem:[%s6 + $0x108] sm:$0xff]
    %v526 = vld [vmem:[%s6 + $0x110] sm:$0xff]
    %v527 = vld [vmem:[%s6 + $0x118] sm:$0xff]
    %v528 = vld [vmem:[%s6 + $0x120] sm:$0xff]
    %v529 = vld [vmem:[%s6 + $0x128] sm:$0xff]
    %v530 = vld [vmem:[%s6 + $0x130] sm:$0xff]
    %v531 = vld [vmem:[%s6 + $0x138] sm:$0xff]
    %v532 = vld [vmem:[%s6 + $0x140] sm:$0xff]
    %v533 = vld [vmem:[%s6 + $0x148] sm:$0xff]
    %v534 = vld [vmem:[%s6 + $0x150] sm:$0xff]
    %v535 = vld [vmem:[%s6 + $0x158] sm:$0xff]
    %v536 = vld [vmem:[%s6 + $0x160] sm:$0xff]
    %v537 = vld [vmem:[%s6 + $0x168] sm:$0xff]
    %v538 = vld [vmem:[%s6 + $0x170] sm:$0xff]
    %v539 = vld [vmem:[%s6 + $0x178] sm:$0xff]
    %v540 = vld [vmem:[%s6 + $0x180] sm:$0xff]
    %v541 = vld [vmem:[%s6 + $0x188] sm:$0xff]
    %v542 = vld [vmem:[%s6 + $0x190] sm:$0xff]
    %v543 = vld [vmem:[%s6 + $0x198] sm:$0xff]
    %v544 = vld [vmem:[%s6 + $0x1a0] sm:$0xff]
    %v545 = vld [vmem:[%s6 + $0x1a8] sm:$0xff]
    %v546 = vld [vmem:[%s6 + $0x1b0] sm:$0xff]
    %v547 = vld [vmem:[%s6 + $0x1b8] sm:$0xff]
    %v548 = vld [vmem:[%s6 + $0x1c0] sm:$0xff]
    %v549 = vld [vmem:[%s6 + $0x1c8] sm:$0xff]
    %v550 = vld [vmem:[%s6 + $0x1d0] sm:$0xff]
    %v551 = vld [vmem:[%s6 + $0x1d8] sm:$0xff]
    %v552 = vld [vmem:[%s6 + $0x1e0] sm:$0xff]
    %v553 = vld [vmem:[%s6 + $0x1e8] sm:$0xff]
    %v554 = vld [vmem:[%s6 + $0x1f0] sm:$0xff]
    %v555 = vld [vmem:[%s6 + $0x1f8] sm:$0xff]
    %v556 = vld [vmem:[%s7] sm:$0x3]
    %v558 = vlaneseq
    %v559 = vshrl.u32 %v558, 7
    %v560 = vsub.s32 0, %v559
    %v561 = vrot.slane %v556, %v560
    %v562 = vlaneseq
    %v563 = vshrl.u32 %v562, 7
    %v564 = vsub.s32 1, %v563
    %v565 = vrot.slane %v556, %v564
    %v632 = vunpack.c.l.b16 %v492
    %v633 = vunpack.c.h.b16 %v492
    %v634 = vunpack.c.l.b16 %v493
    %v635 = vunpack.c.h.b16 %v493
    %v636 = vunpack.c.l.b16 %v494
    %v637 = vunpack.c.h.b16 %v494
    %v638 = vunpack.c.l.b16 %v495
    %v639 = vunpack.c.h.b16 %v495
    %v640 = vunpack.c.l.b16 %v496
    %v641 = vunpack.c.h.b16 %v496
    %v642 = vunpack.c.l.b16 %v497
    %v643 = vunpack.c.h.b16 %v497
    %v644 = vunpack.c.l.b16 %v498
    %v645 = vunpack.c.h.b16 %v498
    %v646 = vunpack.c.l.b16 %v499
    %v647 = vunpack.c.h.b16 %v499
    %v648 = vunpack.c.l.b16 %v500
    %v649 = vunpack.c.h.b16 %v500
    %v650 = vunpack.c.l.b16 %v501
    %v651 = vunpack.c.h.b16 %v501
    %v652 = vunpack.c.l.b16 %v502
    %v653 = vunpack.c.h.b16 %v502
    %v654 = vunpack.c.l.b16 %v503
    %v655 = vunpack.c.h.b16 %v503
    %v656 = vunpack.c.l.b16 %v504
    %v657 = vunpack.c.h.b16 %v504
    %v658 = vunpack.c.l.b16 %v505
    %v659 = vunpack.c.h.b16 %v505
    %v660 = vunpack.c.l.b16 %v506
    %v661 = vunpack.c.h.b16 %v506
    %v662 = vunpack.c.l.b16 %v507
    %v663 = vunpack.c.h.b16 %v507
    %v664 = vunpack.c.l.b16 %v508
    %v665 = vunpack.c.h.b16 %v508
    %v666 = vunpack.c.l.b16 %v509
    %v667 = vunpack.c.h.b16 %v509
    %v668 = vunpack.c.l.b16 %v510
    %v669 = vunpack.c.h.b16 %v510
    %v670 = vunpack.c.l.b16 %v511
    %v671 = vunpack.c.h.b16 %v511
    %v672 = vunpack.c.l.b16 %v512
    %v673 = vunpack.c.h.b16 %v512
    %v674 = vunpack.c.l.b16 %v513
    %v675 = vunpack.c.h.b16 %v513
    %v676 = vunpack.c.l.b16 %v514
    %v677 = vunpack.c.h.b16 %v514
    %v678 = vunpack.c.l.b16 %v515
    %v679 = vunpack.c.h.b16 %v515
    %v680 = vunpack.c.l.b16 %v516
    %v681 = vunpack.c.h.b16 %v516
    %v682 = vunpack.c.l.b16 %v517
    %v683 = vunpack.c.h.b16 %v517
    %v684 = vunpack.c.l.b16 %v518
    %v685 = vunpack.c.h.b16 %v518
    %v686 = vunpack.c.l.b16 %v519
    %v687 = vunpack.c.h.b16 %v519
    %v688 = vunpack.c.l.b16 %v520
    %v689 = vunpack.c.h.b16 %v520
    %v690 = vunpack.c.l.b16 %v521
    %v691 = vunpack.c.h.b16 %v521
    %v692 = vunpack.c.l.b16 %v522
    %v693 = vunpack.c.h.b16 %v522
    %v694 = vunpack.c.l.b16 %v523
    %v695 = vunpack.c.h.b16 %v523
    %v696 = vunpack.c.l.b16 %v524
    %v697 = vunpack.c.h.b16 %v524
    %v698 = vunpack.c.l.b16 %v525
    %v699 = vunpack.c.h.b16 %v525
    %v700 = vunpack.c.l.b16 %v526
    %v701 = vunpack.c.h.b16 %v526
    %v702 = vunpack.c.l.b16 %v527
    %v703 = vunpack.c.h.b16 %v527
    %v704 = vunpack.c.l.b16 %v528
    %v705 = vunpack.c.h.b16 %v528
    %v706 = vunpack.c.l.b16 %v529
    %v707 = vunpack.c.h.b16 %v529
    %v708 = vunpack.c.l.b16 %v530
    %v709 = vunpack.c.h.b16 %v530
    %v710 = vunpack.c.l.b16 %v531
    %v711 = vunpack.c.h.b16 %v531
    %v712 = vunpack.c.l.b16 %v532
    %v713 = vunpack.c.h.b16 %v532
    %v714 = vunpack.c.l.b16 %v533
    %v715 = vunpack.c.h.b16 %v533
    %v716 = vunpack.c.l.b16 %v534
    %v717 = vunpack.c.h.b16 %v534
    %v718 = vunpack.c.l.b16 %v535
    %v719 = vunpack.c.h.b16 %v535
    %v720 = vunpack.c.l.b16 %v536
    %v721 = vunpack.c.h.b16 %v536
    %v722 = vunpack.c.l.b16 %v537
    %v723 = vunpack.c.h.b16 %v537
    %v724 = vunpack.c.l.b16 %v538
    %v725 = vunpack.c.h.b16 %v538
    %v726 = vunpack.c.l.b16 %v539
    %v727 = vunpack.c.h.b16 %v539
    %v728 = vunpack.c.l.b16 %v540
    %v729 = vunpack.c.h.b16 %v540
    %v730 = vunpack.c.l.b16 %v541
    %v731 = vunpack.c.h.b16 %v541
    %v732 = vunpack.c.l.b16 %v542
    %v733 = vunpack.c.h.b16 %v542
    %v734 = vunpack.c.l.b16 %v543
    %v735 = vunpack.c.h.b16 %v543
    %v736 = vunpack.c.l.b16 %v544
    %v737 = vunpack.c.h.b16 %v544
    %v738 = vunpack.c.l.b16 %v545
    %v739 = vunpack.c.h.b16 %v545
    %v740 = vunpack.c.l.b16 %v546
    %v741 = vunpack.c.h.b16 %v546
    %v742 = vunpack.c.l.b16 %v547
    %v743 = vunpack.c.h.b16 %v547
    %v744 = vunpack.c.l.b16 %v548
    %v745 = vunpack.c.h.b16 %v548
    %v746 = vunpack.c.l.b16 %v549
    %v747 = vunpack.c.h.b16 %v549
    %v748 = vunpack.c.l.b16 %v550
    %v749 = vunpack.c.h.b16 %v550
    %v750 = vunpack.c.l.b16 %v551
    %v751 = vunpack.c.h.b16 %v551
    %v752 = vunpack.c.l.b16 %v552
    %v753 = vunpack.c.h.b16 %v552
    %v754 = vunpack.c.l.b16 %v553
    %v755 = vunpack.c.h.b16 %v553
    %v756 = vunpack.c.l.b16 %v554
    %v757 = vunpack.c.h.b16 %v554
    %v758 = vunpack.c.l.b16 %v555
    %v759 = vunpack.c.h.b16 %v555
    %v760 = vpack.c.b16 %v634, %v632
    %v761 = vpack.c.b16 %v635, %v633
    %v762 = vpack.c.b16 %v638, %v636
    %v763 = vpack.c.b16 %v639, %v637
    %v764 = vpack.c.b16 %v642, %v640
    %v765 = vpack.c.b16 %v643, %v641
    %v766 = vpack.c.b16 %v646, %v644
    %v767 = vpack.c.b16 %v647, %v645
    %v768 = vpack.c.b16 %v650, %v648
    %v769 = vpack.c.b16 %v651, %v649
    %v770 = vpack.c.b16 %v654, %v652
    %v771 = vpack.c.b16 %v655, %v653
    %v772 = vpack.c.b16 %v658, %v656
    %v773 = vpack.c.b16 %v659, %v657
    %v774 = vpack.c.b16 %v662, %v660
    %v775 = vpack.c.b16 %v663, %v661
    %v776 = vpack.c.b16 %v666, %v664
    %v777 = vpack.c.b16 %v667, %v665
    %v778 = vpack.c.b16 %v670, %v668
    %v779 = vpack.c.b16 %v671, %v669
    %v780 = vpack.c.b16 %v674, %v672
    %v781 = vpack.c.b16 %v675, %v673
    %v782 = vpack.c.b16 %v678, %v676
    %v783 = vpack.c.b16 %v679, %v677
    %v784 = vpack.c.b16 %v682, %v680
    %v785 = vpack.c.b16 %v683, %v681
    %v786 = vpack.c.b16 %v686, %v684
    %v787 = vpack.c.b16 %v687, %v685
    %v788 = vpack.c.b16 %v690, %v688
    %v789 = vpack.c.b16 %v691, %v689
    %v790 = vpack.c.b16 %v694, %v692
    %v791 = vpack.c.b16 %v695, %v693
    %v792 = vpack.c.b16 %v698, %v696
    %v793 = vpack.c.b16 %v699, %v697
    %v794 = vpack.c.b16 %v702, %v700
    %v795 = vpack.c.b16 %v703, %v701
    %v796 = vpack.c.b16 %v706, %v704
    %v797 = vpack.c.b16 %v707, %v705
    %v798 = vpack.c.b16 %v710, %v708
    %v799 = vpack.c.b16 %v711, %v709
    %v800 = vpack.c.b16 %v714, %v712
    %v801 = vpack.c.b16 %v715, %v713
    %v802 = vpack.c.b16 %v718, %v716
    %v803 = vpack.c.b16 %v719, %v717
    %v804 = vpack.c.b16 %v722, %v720
    %v805 = vpack.c.b16 %v723, %v721
    %v806 = vpack.c.b16 %v726, %v724
    %v807 = vpack.c.b16 %v727, %v725
    %v808 = vpack.c.b16 %v730, %v728
    %v809 = vpack.c.b16 %v731, %v729
    %v810 = vpack.c.b16 %v734, %v732
    %v811 = vpack.c.b16 %v735, %v733
    %v812 = vpack.c.b16 %v738, %v736
    %v813 = vpack.c.b16 %v739, %v737
    %v814 = vpack.c.b16 %v742, %v740
    %v815 = vpack.c.b16 %v743, %v741
    %v816 = vpack.c.b16 %v746, %v744
    %v817 = vpack.c.b16 %v747, %v745
    %v818 = vpack.c.b16 %v750, %v748
    %v819 = vpack.c.b16 %v751, %v749
    %v820 = vpack.c.b16 %v754, %v752
    %v821 = vpack.c.b16 %v755, %v753
    %v822 = vpack.c.b16 %v758, %v756
    %v823 = vpack.c.b16 %v759, %v757
    %888 = vmatprep.subr.bf16.mxu0 %v761
    %889 = vmatpush1.bf16.msra.mxu0 %v760
    %890 = vmatprep.subr.bf16.mxu0 %v763
    %891 = vmatpush1.bf16.msra.mxu0 %v762
    %892 = vmatprep.subr.bf16.mxu0 %v765
    %893 = vmatpush1.bf16.msra.mxu0 %v764
    %894 = vmatprep.subr.bf16.mxu0 %v767
    %895 = vmatpush1.bf16.msra.mxu0 %v766
    %896 = vmatprep.subr.bf16.mxu0 %v769
    %897 = vmatpush1.bf16.msra.mxu0 %v768
    %898 = vmatprep.subr.bf16.mxu0 %v771
    %899 = vmatpush1.bf16.msra.mxu0 %v770
    %900 = vmatprep.subr.bf16.mxu0 %v773
    %901 = vmatpush1.bf16.msra.mxu0 %v772
    %902 = vmatprep.subr.bf16.mxu0 %v775
    %903 = vmatpush1.bf16.msra.mxu0 %v774
    %904 = vmatprep.subr.bf16.mxu0 %v777
    %905 = vmatpush1.bf16.msra.mxu0 %v776
    %906 = vmatprep.subr.bf16.mxu0 %v779
    %907 = vmatpush1.bf16.msra.mxu0 %v778
    %908 = vmatprep.subr.bf16.mxu0 %v781
    %909 = vmatpush1.bf16.msra.mxu0 %v780
    %910 = vmatprep.subr.bf16.mxu0 %v783
    %911 = vmatpush1.bf16.msra.mxu0 %v782
    %912 = vmatprep.subr.bf16.mxu0 %v785
    %913 = vmatpush1.bf16.msra.mxu0 %v784
    %914 = vmatprep.subr.bf16.mxu0 %v787
    %915 = vmatpush1.bf16.msra.mxu0 %v786
    %916 = vmatprep.subr.bf16.mxu0 %v789
    %917 = vmatpush1.bf16.msra.mxu0 %v788
    %918 = vmatprep.subr.bf16.mxu0 %v791
    %919 = vmatpush1.bf16.msra.mxu0 %v790
    %920 = vmatprep.mubr.bf16.mxu0 %v489
    %921 = vmatmul.mubr.bf16.gmra.mrb[0].mxu0 %v488
    %v922 = vpop.f32.mrb[0].mxu0
    %v923 = vadd.f32 %v561, %v922
    %v924 = vpop.f32.mrb[0].mxu0
    %v925 = vadd.f32 %v565, %v924
    %v926 = vpop.f32.mrb[0].mxu0
    %v927 = vpop.f32.mrb[0].mxu0
    %928 = vdwg.mxu0
    %929 = vmatprep.subr.bf16.mxu0 %v793
    %930 = vmatpush1.bf16.msra.mxu0 %v792
    %931 = vmatprep.subr.bf16.mxu0 %v795
    %932 = vmatpush1.bf16.msra.mxu0 %v794
    %933 = vmatprep.subr.bf16.mxu0 %v797
    %934 = vmatpush1.bf16.msra.mxu0 %v796
    %935 = vmatprep.subr.bf16.mxu0 %v799
    %936 = vmatpush1.bf16.msra.mxu0 %v798
    %937 = vmatprep.subr.bf16.mxu0 %v801
    %938 = vmatpush1.bf16.msra.mxu0 %v800
    %939 = vmatprep.subr.bf16.mxu0 %v803
    %940 = vmatpush1.bf16.msra.mxu0 %v802
    %941 = vmatprep.subr.bf16.mxu0 %v805
    %942 = vmatpush1.bf16.msra.mxu0 %v804
    %943 = vmatprep.subr.bf16.mxu0 %v807
    %944 = vmatpush1.bf16.msra.mxu0 %v806
    %945 = vmatprep.subr.bf16.mxu0 %v809
    %946 = vmatpush1.bf16.msra.mxu0 %v808
    %947 = vmatprep.subr.bf16.mxu0 %v811
    %948 = vmatpush1.bf16.msra.mxu0 %v810
    %949 = vmatprep.subr.bf16.mxu0 %v813
    %950 = vmatpush1.bf16.msra.mxu0 %v812
    %951 = vmatprep.subr.bf16.mxu0 %v815
    %952 = vmatpush1.bf16.msra.mxu0 %v814
    %953 = vmatprep.subr.bf16.mxu0 %v817
    %954 = vmatpush1.bf16.msra.mxu0 %v816
    %955 = vmatprep.subr.bf16.mxu0 %v819
    %956 = vmatpush1.bf16.msra.mxu0 %v818
    %957 = vmatprep.subr.bf16.mxu0 %v821
    %958 = vmatpush1.bf16.msra.mxu0 %v820
    %959 = vmatprep.subr.bf16.mxu0 %v823
    %960 = vmatpush1.bf16.msra.mxu0 %v822
    %961 = vmatprep.mubr.bf16.mxu0 %v491
    %962 = vmatmul.mubr.bf16.gmra.mrb[0].mxu0 %v490
    %v963 = vpop.f32.mrb[0].mxu0
    %v964 = vadd.f32 %v923, %v963
    %v965 = vpop.f32.mrb[0].mxu0
    %v966 = vadd.f32 %v925, %v965
    %v967 = vpop.f32.mrb[0].mxu0
    %v968 = vpop.f32.mrb[0].mxu0
    %969 = vdwg.mxu0
    %v970 = vmax.f32 %v964, 0.0
    %v971 = vmax.f32 %v966, 0.0
    %v972 = vpack.c.bf16 %v291, %v291
    %v973 = vpack.c.bf16 %v293, %v293
    %v974 = vpack.c.bf16 %v332, %v332
    %v975 = vpack.c.bf16 %v334, %v334
    %v976 = vpack.c.bf16 %v970, %v970
    %v977 = vpack.c.bf16 %v971, %v971
    %v978 = vunpack.c.l.bf16 %v972
    %v979 = vunpack.c.l.bf16 %v973
    %v980 = vunpack.c.l.bf16 %v974
    %v981 = vunpack.c.l.bf16 %v975
    %v982 = vunpack.c.l.bf16 %v976
    %v983 = vunpack.c.l.bf16 %v977
    %v984 = vmul.f32 %v978, %v978
    %v985 = vmul.f32 %v979, %v979
    %v986 = vmul.f32 %v980, %v980
    %v987 = vmul.f32 %v981, %v981
    %vm988 = vcmask 1041408
    %v989 = vsel %vm988, %v984, 0.0
    %v990 = vsel %vm988, %v985, 0.0
    %v991 = vadd.f32 %v989, %v990
    %v992 = vsel %vm988, %v986, 0.0
    %v993 = vadd.f32 %v991, %v992
    %v994 = vsel %vm988, %v987, 0.0
    %v995 = vadd.f32 %v993, %v994
    %996 = vadd.xlane.f32.xlu0 %v995
    %v997 = vpop.xlane.xlu0 %996
    %v998 = vmul.f32 %v982, %v982
    %v999 = vmul.f32 %v983, %v983
    %v1000 = vsel %vm988, %v998, 0.0
    %v1001 = vsel %vm988, %v999, 0.0
    %v1002 = vadd.f32 %v1000, %v1001
    %1003 = vadd.xlane.f32.xlu0 %v1002
    %v1004 = vpop.xlane.xlu0 %1003
    %v1005 = vadd.f32 %v997, %v1004
    %v1006 = vmax.f32 %v1005, 1e-24
    %v1007 = vrsqrt.pop %v1006
    %v1008 = vld [vmem:[%s8] sm:$0xf]
    %v1009 = vld [vmem:[%s8 + $0x4] sm:$0xf]
    %v1010 = vld [vmem:[%s8 + $0x8] sm:$0xf]
    %v1011 = vld [vmem:[%s8 + $0xc] sm:$0xf]
    %v1012 = vld [vmem:[%s8 + $0x10] sm:$0xf]
    %v1013 = vld [vmem:[%s8 + $0x14] sm:$0xf]
    %v1014 = vld [vmem:[%s8 + $0x18] sm:$0xf]
    %v1015 = vld [vmem:[%s8 + $0x1c] sm:$0xf]
    %v1016 = vld [vmem:[%s8 + $0x20] sm:$0xf]
    %v1017 = vld [vmem:[%s8 + $0x24] sm:$0xf]
    %v1018 = vld [vmem:[%s8 + $0x28] sm:$0xf]
    %v1019 = vld [vmem:[%s8 + $0x2c] sm:$0xf]
    %v1020 = vld [vmem:[%s8 + $0x30] sm:$0xf]
    %v1021 = vld [vmem:[%s8 + $0x34] sm:$0xf]
    %v1022 = vld [vmem:[%s8 + $0x38] sm:$0xf]
    %v1023 = vld [vmem:[%s8 + $0x3c] sm:$0xf]
    %v1024 = vld [vmem:[%s8 + $0x40] sm:$0xf]
    %v1025 = vld [vmem:[%s8 + $0x44] sm:$0xf]
    %v1026 = vld [vmem:[%s8 + $0x48] sm:$0xf]
    %v1027 = vld [vmem:[%s8 + $0x4c] sm:$0xf]
    %v1028 = vld [vmem:[%s8 + $0x50] sm:$0xf]
    %v1029 = vld [vmem:[%s8 + $0x54] sm:$0xf]
    %v1030 = vld [vmem:[%s8 + $0x58] sm:$0xf]
    %v1031 = vld [vmem:[%s8 + $0x5c] sm:$0xf]
    %v1032 = vld [vmem:[%s8 + $0x60] sm:$0xf]
    %v1033 = vld [vmem:[%s8 + $0x64] sm:$0xf]
    %v1034 = vld [vmem:[%s8 + $0x68] sm:$0xf]
    %v1035 = vld [vmem:[%s8 + $0x6c] sm:$0xf]
    %v1036 = vld [vmem:[%s8 + $0x70] sm:$0xf]
    %v1037 = vld [vmem:[%s8 + $0x74] sm:$0xf]
    %v1038 = vld [vmem:[%s8 + $0x78] sm:$0xf]
    %v1039 = vld [vmem:[%s8 + $0x7c] sm:$0xf]
    %v1040 = vld [vmem:[%s8 + $0x80] sm:$0xf]
    %v1041 = vld [vmem:[%s8 + $0x84] sm:$0xf]
    %v1042 = vld [vmem:[%s8 + $0x88] sm:$0xf]
    %v1043 = vld [vmem:[%s8 + $0x8c] sm:$0xf]
    %v1044 = vld [vmem:[%s8 + $0x90] sm:$0xf]
    %v1045 = vld [vmem:[%s8 + $0x94] sm:$0xf]
    %v1046 = vld [vmem:[%s8 + $0x98] sm:$0xf]
    %v1047 = vld [vmem:[%s8 + $0x9c] sm:$0xf]
    %v1048 = vld [vmem:[%s8 + $0xa0] sm:$0xf]
    %v1049 = vld [vmem:[%s8 + $0xa4] sm:$0xf]
    %v1050 = vld [vmem:[%s8 + $0xa8] sm:$0xf]
    %v1051 = vld [vmem:[%s8 + $0xac] sm:$0xf]
    %v1052 = vld [vmem:[%s8 + $0xb0] sm:$0xf]
    %v1053 = vld [vmem:[%s8 + $0xb4] sm:$0xf]
    %v1054 = vld [vmem:[%s8 + $0xb8] sm:$0xf]
    %v1055 = vld [vmem:[%s8 + $0xbc] sm:$0xf]
    %v1056 = vld [vmem:[%s8 + $0xc0] sm:$0xf]
    %v1057 = vld [vmem:[%s8 + $0xc4] sm:$0xf]
    %v1058 = vld [vmem:[%s8 + $0xc8] sm:$0xf]
    %v1059 = vld [vmem:[%s8 + $0xcc] sm:$0xf]
    %v1060 = vld [vmem:[%s8 + $0xd0] sm:$0xf]
    %v1061 = vld [vmem:[%s8 + $0xd4] sm:$0xf]
    %v1062 = vld [vmem:[%s8 + $0xd8] sm:$0xf]
    %v1063 = vld [vmem:[%s8 + $0xdc] sm:$0xf]
    %v1064 = vld [vmem:[%s8 + $0xe0] sm:$0xf]
    %v1065 = vld [vmem:[%s8 + $0xe4] sm:$0xf]
    %v1066 = vld [vmem:[%s8 + $0xe8] sm:$0xf]
    %v1067 = vld [vmem:[%s8 + $0xec] sm:$0xf]
    %v1068 = vld [vmem:[%s8 + $0xf0] sm:$0xf]
    %v1069 = vld [vmem:[%s8 + $0xf4] sm:$0xf]
    %v1070 = vld [vmem:[%s8 + $0xf8] sm:$0xf]
    %v1071 = vld [vmem:[%s8 + $0xfc] sm:$0xf]
    %v1072 = vld [vmem:[%s9] sm:$0xf]
    %v1073 = vld [vmem:[%s9 + $0x4] sm:$0xf]
    %v1074 = vld [vmem:[%s9 + $0x8] sm:$0xf]
    %v1075 = vld [vmem:[%s9 + $0xc] sm:$0xf]
    %v1076 = vld [vmem:[%s9 + $0x10] sm:$0xf]
    %v1077 = vld [vmem:[%s9 + $0x14] sm:$0xf]
    %v1078 = vld [vmem:[%s9 + $0x18] sm:$0xf]
    %v1079 = vld [vmem:[%s9 + $0x1c] sm:$0xf]
    %v1080 = vld [vmem:[%s9 + $0x20] sm:$0xf]
    %v1081 = vld [vmem:[%s9 + $0x24] sm:$0xf]
    %v1082 = vld [vmem:[%s9 + $0x28] sm:$0xf]
    %v1083 = vld [vmem:[%s9 + $0x2c] sm:$0xf]
    %v1084 = vld [vmem:[%s9 + $0x30] sm:$0xf]
    %v1085 = vld [vmem:[%s9 + $0x34] sm:$0xf]
    %v1086 = vld [vmem:[%s9 + $0x38] sm:$0xf]
    %v1087 = vld [vmem:[%s9 + $0x3c] sm:$0xf]
    %v1088 = vld [vmem:[%s9 + $0x40] sm:$0xf]
    %v1089 = vld [vmem:[%s9 + $0x44] sm:$0xf]
    %v1090 = vld [vmem:[%s9 + $0x48] sm:$0xf]
    %v1091 = vld [vmem:[%s9 + $0x4c] sm:$0xf]
    %v1092 = vld [vmem:[%s9 + $0x50] sm:$0xf]
    %v1093 = vld [vmem:[%s9 + $0x54] sm:$0xf]
    %v1094 = vld [vmem:[%s9 + $0x58] sm:$0xf]
    %v1095 = vld [vmem:[%s9 + $0x5c] sm:$0xf]
    %v1096 = vld [vmem:[%s9 + $0x60] sm:$0xf]
    %v1097 = vld [vmem:[%s9 + $0x64] sm:$0xf]
    %v1098 = vld [vmem:[%s9 + $0x68] sm:$0xf]
    %v1099 = vld [vmem:[%s9 + $0x6c] sm:$0xf]
    %v1100 = vld [vmem:[%s9 + $0x70] sm:$0xf]
    %v1101 = vld [vmem:[%s9 + $0x74] sm:$0xf]
    %v1102 = vld [vmem:[%s9 + $0x78] sm:$0xf]
    %v1103 = vld [vmem:[%s9 + $0x7c] sm:$0xf]
    %v1136 = vunpack.c.l.b16 %v1072
    %v1137 = vunpack.c.l.b16 %v1073
    %v1138 = vunpack.c.l.b16 %v1074
    %v1139 = vunpack.c.l.b16 %v1075
    %v1140 = vunpack.c.l.b16 %v1076
    %v1141 = vunpack.c.l.b16 %v1077
    %v1142 = vunpack.c.l.b16 %v1078
    %v1143 = vunpack.c.l.b16 %v1079
    %v1144 = vunpack.c.l.b16 %v1080
    %v1145 = vunpack.c.l.b16 %v1081
    %v1146 = vunpack.c.l.b16 %v1082
    %v1147 = vunpack.c.l.b16 %v1083
    %v1148 = vunpack.c.l.b16 %v1084
    %v1149 = vunpack.c.l.b16 %v1085
    %v1150 = vunpack.c.l.b16 %v1086
    %v1151 = vunpack.c.l.b16 %v1087
    %v1152 = vunpack.c.l.b16 %v1088
    %v1153 = vunpack.c.l.b16 %v1089
    %v1154 = vunpack.c.l.b16 %v1090
    %v1155 = vunpack.c.l.b16 %v1091
    %v1156 = vunpack.c.l.b16 %v1092
    %v1157 = vunpack.c.l.b16 %v1093
    %v1158 = vunpack.c.l.b16 %v1094
    %v1159 = vunpack.c.l.b16 %v1095
    %v1160 = vunpack.c.l.b16 %v1096
    %v1161 = vunpack.c.l.b16 %v1097
    %v1162 = vunpack.c.l.b16 %v1098
    %v1163 = vunpack.c.l.b16 %v1099
    %v1164 = vunpack.c.l.b16 %v1100
    %v1165 = vunpack.c.l.b16 %v1101
    %v1166 = vunpack.c.l.b16 %v1102
    %v1167 = vunpack.c.l.b16 %v1103
    %v1168 = vpack.c.b16 %v1137, %v1136
    %v1169 = vpack.c.b16 %v1139, %v1138
    %v1170 = vpack.c.b16 %v1141, %v1140
    %v1171 = vpack.c.b16 %v1143, %v1142
    %v1172 = vpack.c.b16 %v1145, %v1144
    %v1173 = vpack.c.b16 %v1147, %v1146
    %v1174 = vpack.c.b16 %v1149, %v1148
    %v1175 = vpack.c.b16 %v1151, %v1150
    %v1176 = vpack.c.b16 %v1153, %v1152
    %v1177 = vpack.c.b16 %v1155, %v1154
    %v1178 = vpack.c.b16 %v1157, %v1156
    %v1179 = vpack.c.b16 %v1159, %v1158
    %v1180 = vpack.c.b16 %v1161, %v1160
    %v1181 = vpack.c.b16 %v1163, %v1162
    %v1182 = vpack.c.b16 %v1165, %v1164
    %v1183 = vpack.c.b16 %v1167, %v1166
    %1200 = vmatprep.subr.bf16.mxu0 0
    %1201 = vmatpush1.bf16.msra.mxu0 %v1168
    %1202 = vmatprep.subr.bf16.mxu0 0
    %1203 = vmatpush1.bf16.msra.mxu0 %v1169
    %1204 = vmatprep.subr.bf16.mxu0 0
    %1205 = vmatpush1.bf16.msra.mxu0 %v1170
    %1206 = vmatprep.subr.bf16.mxu0 0
    %1207 = vmatpush1.bf16.msra.mxu0 %v1171
    %1208 = vmatprep.subr.bf16.mxu0 0
    %1209 = vmatpush1.bf16.msra.mxu0 %v1172
    %1210 = vmatprep.subr.bf16.mxu0 0
    %1211 = vmatpush1.bf16.msra.mxu0 %v1173
    %1212 = vmatprep.subr.bf16.mxu0 0
    %1213 = vmatpush1.bf16.msra.mxu0 %v1174
    %1214 = vmatprep.subr.bf16.mxu0 0
    %1215 = vmatpush1.bf16.msra.mxu0 %v1175
    %1216 = vmatprep.subr.bf16.mxu0 0
    %1217 = vmatpush1.bf16.msra.mxu0 %v1176
    %1218 = vmatprep.subr.bf16.mxu0 0
    %1219 = vmatpush1.bf16.msra.mxu0 %v1177
    %1220 = vmatprep.subr.bf16.mxu0 0
    %1221 = vmatpush1.bf16.msra.mxu0 %v1178
    %1222 = vmatprep.subr.bf16.mxu0 0
    %1223 = vmatpush1.bf16.msra.mxu0 %v1179
    %1224 = vmatprep.subr.bf16.mxu0 0
    %1225 = vmatpush1.bf16.msra.mxu0 %v1180
    %1226 = vmatprep.subr.bf16.mxu0 0
    %1227 = vmatpush1.bf16.msra.mxu0 %v1181
    %1228 = vmatprep.subr.bf16.mxu0 0
    %1229 = vmatpush1.bf16.msra.mxu0 %v1182
    %1230 = vmatprep.subr.bf16.mxu0 0
    %1231 = vmatpush1.bf16.msra.mxu0 %v1183
    %1232 = vmatprep.mubr.bf16.mxu0 %v977
    %1233 = vmatmul.mubr.bf16.gmra.mrb[0].mxu0 %v976
    %v1234 = vpop.f32.mrb[0].mxu0
    %v1235 = vadd.f32 0.0, %v1234
    %v1236 = vpop.f32.mrb[0].mxu0
    %v1237 = vpop.f32.mrb[0].mxu0
    %v1238 = vpop.f32.mrb[0].mxu0
    %1239 = vdwg.mxu0
    %v1304 = vunpack.c.l.b16 %v1008
    %v1305 = vunpack.c.l.b16 %v1009
    %v1306 = vunpack.c.l.b16 %v1010
    %v1307 = vunpack.c.l.b16 %v1011
    %v1308 = vunpack.c.l.b16 %v1012
    %v1309 = vunpack.c.l.b16 %v1013
    %v1310 = vunpack.c.l.b16 %v1014
    %v1311 = vunpack.c.l.b16 %v1015
    %v1312 = vunpack.c.l.b16 %v1016
    %v1313 = vunpack.c.l.b16 %v1017
    %v1314 = vunpack.c.l.b16 %v1018
    %v1315 = vunpack.c.l.b16 %v1019
    %v1316 = vunpack.c.l.b16 %v1020
    %v1317 = vunpack.c.l.b16 %v1021
    %v1318 = vunpack.c.l.b16 %v1022
    %v1319 = vunpack.c.l.b16 %v1023
    %v1320 = vunpack.c.l.b16 %v1024
    %v1321 = vunpack.c.l.b16 %v1025
    %v1322 = vunpack.c.l.b16 %v1026
    %v1323 = vunpack.c.l.b16 %v1027
    %v1324 = vunpack.c.l.b16 %v1028
    %v1325 = vunpack.c.l.b16 %v1029
    %v1326 = vunpack.c.l.b16 %v1030
    %v1327 = vunpack.c.l.b16 %v1031
    %v1328 = vunpack.c.l.b16 %v1032
    %v1329 = vunpack.c.l.b16 %v1033
    %v1330 = vunpack.c.l.b16 %v1034
    %v1331 = vunpack.c.l.b16 %v1035
    %v1332 = vunpack.c.l.b16 %v1036
    %v1333 = vunpack.c.l.b16 %v1037
    %v1334 = vunpack.c.l.b16 %v1038
    %v1335 = vunpack.c.l.b16 %v1039
    %v1336 = vunpack.c.l.b16 %v1040
    %v1337 = vunpack.c.l.b16 %v1041
    %v1338 = vunpack.c.l.b16 %v1042
    %v1339 = vunpack.c.l.b16 %v1043
    %v1340 = vunpack.c.l.b16 %v1044
    %v1341 = vunpack.c.l.b16 %v1045
    %v1342 = vunpack.c.l.b16 %v1046
    %v1343 = vunpack.c.l.b16 %v1047
    %v1344 = vunpack.c.l.b16 %v1048
    %v1345 = vunpack.c.l.b16 %v1049
    %v1346 = vunpack.c.l.b16 %v1050
    %v1347 = vunpack.c.l.b16 %v1051
    %v1348 = vunpack.c.l.b16 %v1052
    %v1349 = vunpack.c.l.b16 %v1053
    %v1350 = vunpack.c.l.b16 %v1054
    %v1351 = vunpack.c.l.b16 %v1055
    %v1352 = vunpack.c.l.b16 %v1056
    %v1353 = vunpack.c.l.b16 %v1057
    %v1354 = vunpack.c.l.b16 %v1058
    %v1355 = vunpack.c.l.b16 %v1059
    %v1356 = vunpack.c.l.b16 %v1060
    %v1357 = vunpack.c.l.b16 %v1061
    %v1358 = vunpack.c.l.b16 %v1062
    %v1359 = vunpack.c.l.b16 %v1063
    %v1360 = vunpack.c.l.b16 %v1064
    %v1361 = vunpack.c.l.b16 %v1065
    %v1362 = vunpack.c.l.b16 %v1066
    %v1363 = vunpack.c.l.b16 %v1067
    %v1364 = vunpack.c.l.b16 %v1068
    %v1365 = vunpack.c.l.b16 %v1069
    %v1366 = vunpack.c.l.b16 %v1070
    %v1367 = vunpack.c.l.b16 %v1071
    %v1368 = vpack.c.b16 %v1305, %v1304
    %v1369 = vpack.c.b16 %v1307, %v1306
    %v1370 = vpack.c.b16 %v1309, %v1308
    %v1371 = vpack.c.b16 %v1311, %v1310
    %v1372 = vpack.c.b16 %v1313, %v1312
    %v1373 = vpack.c.b16 %v1315, %v1314
    %v1374 = vpack.c.b16 %v1317, %v1316
    %v1375 = vpack.c.b16 %v1319, %v1318
    %v1376 = vpack.c.b16 %v1321, %v1320
    %v1377 = vpack.c.b16 %v1323, %v1322
    %v1378 = vpack.c.b16 %v1325, %v1324
    %v1379 = vpack.c.b16 %v1327, %v1326
    %v1380 = vpack.c.b16 %v1329, %v1328
    %v1381 = vpack.c.b16 %v1331, %v1330
    %v1382 = vpack.c.b16 %v1333, %v1332
    %v1383 = vpack.c.b16 %v1335, %v1334
    %v1384 = vpack.c.b16 %v1337, %v1336
    %v1385 = vpack.c.b16 %v1339, %v1338
    %v1386 = vpack.c.b16 %v1341, %v1340
    %v1387 = vpack.c.b16 %v1343, %v1342
    %v1388 = vpack.c.b16 %v1345, %v1344
    %v1389 = vpack.c.b16 %v1347, %v1346
    %v1390 = vpack.c.b16 %v1349, %v1348
    %v1391 = vpack.c.b16 %v1351, %v1350
    %v1392 = vpack.c.b16 %v1353, %v1352
    %v1393 = vpack.c.b16 %v1355, %v1354
    %v1394 = vpack.c.b16 %v1357, %v1356
    %v1395 = vpack.c.b16 %v1359, %v1358
    %v1396 = vpack.c.b16 %v1361, %v1360
    %v1397 = vpack.c.b16 %v1363, %v1362
    %v1398 = vpack.c.b16 %v1365, %v1364
    %v1399 = vpack.c.b16 %v1367, %v1366
    %1432 = vmatprep.subr.bf16.mxu0 0
    %1433 = vmatpush1.bf16.msra.mxu0 %v1368
    %1434 = vmatprep.subr.bf16.mxu0 0
    %1435 = vmatpush1.bf16.msra.mxu0 %v1369
    %1436 = vmatprep.subr.bf16.mxu0 0
    %1437 = vmatpush1.bf16.msra.mxu0 %v1370
    %1438 = vmatprep.subr.bf16.mxu0 0
    %1439 = vmatpush1.bf16.msra.mxu0 %v1371
    %1440 = vmatprep.subr.bf16.mxu0 0
    %1441 = vmatpush1.bf16.msra.mxu0 %v1372
    %1442 = vmatprep.subr.bf16.mxu0 0
    %1443 = vmatpush1.bf16.msra.mxu0 %v1373
    %1444 = vmatprep.subr.bf16.mxu0 0
    %1445 = vmatpush1.bf16.msra.mxu0 %v1374
    %1446 = vmatprep.subr.bf16.mxu0 0
    %1447 = vmatpush1.bf16.msra.mxu0 %v1375
    %1448 = vmatprep.subr.bf16.mxu0 0
    %1449 = vmatpush1.bf16.msra.mxu0 %v1376
    %1450 = vmatprep.subr.bf16.mxu0 0
    %1451 = vmatpush1.bf16.msra.mxu0 %v1377
    %1452 = vmatprep.subr.bf16.mxu0 0
    %1453 = vmatpush1.bf16.msra.mxu0 %v1378
    %1454 = vmatprep.subr.bf16.mxu0 0
    %1455 = vmatpush1.bf16.msra.mxu0 %v1379
    %1456 = vmatprep.subr.bf16.mxu0 0
    %1457 = vmatpush1.bf16.msra.mxu0 %v1380
    %1458 = vmatprep.subr.bf16.mxu0 0
    %1459 = vmatpush1.bf16.msra.mxu0 %v1381
    %1460 = vmatprep.subr.bf16.mxu0 0
    %1461 = vmatpush1.bf16.msra.mxu0 %v1382
    %1462 = vmatprep.subr.bf16.mxu0 0
    %1463 = vmatpush1.bf16.msra.mxu0 %v1383
    %1464 = vmatprep.mubr.bf16.mxu0 %v973
    %1465 = vmatmul.mubr.bf16.gmra.mrb[0].mxu0 %v972
    %v1466 = vpop.f32.mrb[0].mxu0
    %v1467 = vadd.f32 %v1235, %v1466
    %v1468 = vpop.f32.mrb[0].mxu0
    %v1469 = vpop.f32.mrb[0].mxu0
    %v1470 = vpop.f32.mrb[0].mxu0
    %1471 = vdwg.mxu0
    %1472 = vmatprep.subr.bf16.mxu0 0
    %1473 = vmatpush1.bf16.msra.mxu0 %v1384
    %1474 = vmatprep.subr.bf16.mxu0 0
    %1475 = vmatpush1.bf16.msra.mxu0 %v1385
    %1476 = vmatprep.subr.bf16.mxu0 0
    %1477 = vmatpush1.bf16.msra.mxu0 %v1386
    %1478 = vmatprep.subr.bf16.mxu0 0
    %1479 = vmatpush1.bf16.msra.mxu0 %v1387
    %1480 = vmatprep.subr.bf16.mxu0 0
    %1481 = vmatpush1.bf16.msra.mxu0 %v1388
    %1482 = vmatprep.subr.bf16.mxu0 0
    %1483 = vmatpush1.bf16.msra.mxu0 %v1389
    %1484 = vmatprep.subr.bf16.mxu0 0
    %1485 = vmatpush1.bf16.msra.mxu0 %v1390
    %1486 = vmatprep.subr.bf16.mxu0 0
    %1487 = vmatpush1.bf16.msra.mxu0 %v1391
    %1488 = vmatprep.subr.bf16.mxu0 0
    %1489 = vmatpush1.bf16.msra.mxu0 %v1392
    %1490 = vmatprep.subr.bf16.mxu0 0
    %1491 = vmatpush1.bf16.msra.mxu0 %v1393
    %1492 = vmatprep.subr.bf16.mxu0 0
    %1493 = vmatpush1.bf16.msra.mxu0 %v1394
    %1494 = vmatprep.subr.bf16.mxu0 0
    %1495 = vmatpush1.bf16.msra.mxu0 %v1395
    %1496 = vmatprep.subr.bf16.mxu0 0
    %1497 = vmatpush1.bf16.msra.mxu0 %v1396
    %1498 = vmatprep.subr.bf16.mxu0 0
    %1499 = vmatpush1.bf16.msra.mxu0 %v1397
    %1500 = vmatprep.subr.bf16.mxu0 0
    %1501 = vmatpush1.bf16.msra.mxu0 %v1398
    %1502 = vmatprep.subr.bf16.mxu0 0
    %1503 = vmatpush1.bf16.msra.mxu0 %v1399
    %1504 = vmatprep.mubr.bf16.mxu0 %v975
    %1505 = vmatmul.mubr.bf16.gmra.mrb[0].mxu0 %v974
    %v1506 = vpop.f32.mrb[0].mxu0
    %v1507 = vadd.f32 %v1467, %v1506
    %v1508 = vpop.f32.mrb[0].mxu0
    %v1509 = vpop.f32.mrb[0].mxu0
    %v1510 = vpop.f32.mrb[0].mxu0
    %1511 = vdwg.mxu0
    %v1512 = vmul.f32 %v1507, %v1007
    %v1513 = vld [vmem:[%s10] sm:$0x1]
    %v1515 = vlaneseq
    %v1516 = vshrl.u32 %v1515, 7
    %v1517 = vsub.s32 0, %v1516
    %v1518 = vrot.slane %v1513, %v1517
    %v1520 = vmul.f32 %v1512, %v1518
    %1521 = vst [vmem:[#allocation2] sm:$0x3] %v1520
    // Predicated region
    $region46: #{forward.3} parent=1 // pred_check
      _
    $region47: #{forward.3} parent=1 // pred_check_branch
      %1523 = sbr.rel (0) target = $region49
    $region48: #{forward.3} parent=1 // pred_region
      %s1525 = ssub.s32 32, 32
      %1526 = vsyncadd [#allocation3], %s1525
      %s1528 = sshll.u32 [#allocation2], 4
      %s1529 = int_to_ptr.vmem [resolvable:$true] %s1528
      %1531 = dma.vmem_to_hbm [thread:$0]  %s1529, 32, %s11, [#allocation3]
    $region49: #{forward.3} parent=1 // pred_fallthru
      _
    // Predicated region
    $region50: #{forward.3} parent=1 // pred_check
      _
    $region51: #{forward.3} parent=1 // pred_check_branch
      %1533 = sbr.rel (0) target = $region53
    $region52: #{forward.3} parent=1 // pred_region
      %1534 = dma.done [#allocation3], 32
    $region53: #{forward.3} parent=1 // pred_fallthru
      _
    %1535 = vsyncpa [#allocation3], 1

</llo_original>
